<compile_context>
chip_gen: v7x
topology: tpu7x:2x2x1
jax: 0.10.0
libtpu: 0.0.40
codegen_flags: <defaults>
</compile_context>

<pallas_src>
import functools

import jax
import jax.numpy as jnp
from jax.experimental import pallas as pl
from jax.experimental.pallas import tpu as pltpu

H1, H2, H3 = 684, 512, 256       # fixed hidden widths from the module
H1_PAD = 768                     # 6 * 128: lane-aligned padding of H1


def _round_up(n, m):
    return ((n + m - 1) // m) * m


def _choose_tb(b_pad, tile_b):
    """Pick a batch tile that (nearly) divides b_pad, amortizes per-step
    overhead, and gives >=2 grid tiles when possible (v7x megacore)."""
    tile_b = max(int(tile_b), 16)
    cands = [c for c in (1024, 512, 256, 128, 64, 32, 16)
             if c <= min(tile_b, b_pad)]
    if not cands:
        return 16

    def score(c):
        padded = _round_up(b_pad, c)
        ntiles = padded // c
        # padded rows = real MXU/DMA work; ~64-row-equivalent overhead per step
        cost = padded + 64 * ntiles
        single = 1 if ntiles < 2 else 0     # prefer >=2 tiles for 2-TC chips
        return (single, cost, -c)

    return min(cands, key=score)


# ---------------------------------------------------------------------------
# Kernel: whole 4-layer MLP for one batch tile. Weights/biases are resident in
# VMEM for the entire grid (constant index_map). bf16 x bf16 matmuls with f32
# accumulation; bias-add / ReLU / tanh in f32; bf16 store.
# ---------------------------------------------------------------------------
def decoder_kernel(x_ref,
                   w1_ref, b1_ref,
                   w2_ref, b2_ref,
                   w3_ref, b3_ref,
                   w4_ref, b4_ref,
                   o_ref):
    h = jnp.dot(x_ref[...], w1_ref[...],
                preferred_element_type=jnp.float32) + b1_ref[...]
    h = jnp.maximum(h, 0.0)                                    # ReLU

    h = jnp.dot(h.astype(jnp.bfloat16), w2_ref[...],
                preferred_element_type=jnp.float32) + b2_ref[...]
    h = jnp.maximum(h, 0.0)                                    # ReLU

    h = jnp.dot(h.astype(jnp.bfloat16), w3_ref[...],
                preferred_element_type=jnp.float32) + b3_ref[...]
    h = jnp.maximum(h, 0.0)                                    # ReLU

    h = jnp.dot(h.astype(jnp.bfloat16), w4_ref[...],
                preferred_element_type=jnp.float32) + b4_ref[...]
    o_ref[...] = jnp.tanh(h).astype(o_ref.dtype)               # Tanh -> bf16


# ---------------------------------------------------------------------------
# Parameter packing: pad hidden/output dims to lane-aligned shapes, cast
# weights to bf16, keep biases f32. Padded bias entries are zero, so ReLU
# keeps padded hidden lanes at exactly 0 and padded output lanes are
# tanh(0)=0 (sliced off afterwards). latent_dim is NOT padded.
# ---------------------------------------------------------------------------
def pack_params(params, latent_dim, output_dim):
    out_p = _round_up(output_dim, 128)

    def pad2(a, rows, cols):
        return jnp.pad(a, ((0, rows - a.shape[0]), (0, cols - a.shape[1])))

    return {
        "w1": pad2(params["w1"], latent_dim, H1_PAD).astype(jnp.bfloat16),
        "b1": pad2(params["b1"], 1, H1_PAD),                       # f32
        "w2": pad2(params["w2"], H1_PAD, H2).astype(jnp.bfloat16),
        "b2": params["b2"],                                        # f32
        "w3": params["w3"].astype(jnp.bfloat16),
        "b3": params["b3"],                                        # f32
        "w4": pad2(params["w4"], H3, out_p).astype(jnp.bfloat16),
        "b4": pad2(params["b4"], 1, out_p),                        # f32
    }


@functools.partial(jax.jit, static_argnums=(2,), static_argnames=("tile_b",))
def decoder_forward(x, packed, output_dim, *, tile_b=512):
    """x: (B, latent_dim) float32. packed: output of pack_params.
    Returns (B, output_dim) bfloat16."""
    B, lat = x.shape
    out_p = packed["w4"].shape[1]

    # Batch tiling: multiple of 16 sublanes (bf16); tb chosen to minimize
    # padding waste + per-step overhead and to give >=2 tiles when possible.
    b_pad = _round_up(max(B, 16), 16)
    tb = _choose_tb(b_pad, tile_b)
    b_pad = _round_up(b_pad, tb)
    grid = (b_pad // tb,)

    # bf16 input slab; padded rows are zero and sliced off after the call.
    xp = jnp.zeros((b_pad, lat), jnp.bfloat16).at[:B, :].set(
        x.astype(jnp.bfloat16))

    def moving(shape):     # batch-tiled operand
        return pl.BlockSpec(shape, lambda i: (i, 0))

    def resident(shape):   # weights/biases: fetched once, stay in VMEM
        return pl.BlockSpec(shape, lambda i: (0, 0))

    weight_bytes = sum(int(packed[k].size) * packed[k].dtype.itemsize
                       for k in packed)
    cost = pl.CostEstimate(
        flops=2 * b_pad * (lat * H1_PAD + H1_PAD * H2 + H2 * H3 + H3 * out_p),
        bytes_accessed=weight_bytes + xp.size * 2 + b_pad * out_p * 2,
        transcendentals=b_pad * out_p,
    )

    out = pl.pallas_call(
        decoder_kernel,
        out_shape=jax.ShapeDtypeStruct((b_pad, out_p), jnp.bfloat16),
        grid=grid,
        in_specs=[
            moving((tb, lat)),
            resident((lat, H1_PAD)),   resident((1, H1_PAD)),
            resident((H1_PAD, H2)),    resident((1, H2)),
            resident((H2, H3)),        resident((1, H3)),
            resident((H3, out_p)),     resident((1, out_p)),
        ],
        out_specs=moving((tb, out_p)),
        compiler_params=pltpu.CompilerParams(
            dimension_semantics=("parallel",)),
        cost_estimate=cost,
    )(xp,
      packed["w1"], packed["b1"],
      packed["w2"], packed["b2"],
      packed["w3"], packed["b3"],
      packed["w4"], packed["b4"])

    return out[:B, :output_dim]


# ---------------------------------------------------------------------------
# Init + references
# ---------------------------------------------------------------------------
def init_params(key, latent_dim, output_dim):
    """PyTorch-Linear-like uniform init; weights stored (in_features, out_features)."""
    dims = [(latent_dim, H1), (H1, H2), (H2, H3), (H3, output_dim)]
    params = {}
    for i, (fan_in, fan_out) in enumerate(dims, start=1):
        key, kw, kb = jax.random.split(key, 3)
        bound = 1.0 / (fan_in ** 0.5)
        params[f"w{i}"] = jax.random.uniform(
            kw, (fan_in, fan_out), jnp.float32, -bound, bound)
        params[f"b{i}"] = jax.random.uniform(
            kb, (1, fan_out), jnp.float32, -bound, bound)
    return params


def decoder_reference_f32(x, params):
    """Plain-JAX f32 reference mirroring the PyTorch forward exactly."""
    h = jnp.maximum(x @ params["w1"] + params["b1"], 0.0)
    h = jnp.maximum(h @ params["w2"] + params["b2"], 0.0)
    h = jnp.maximum(h @ params["w3"] + params["b3"], 0.0)
    return jnp.tanh(h @ params["w4"] + params["b4"])


def decoder_reference_mixed(x, params):
    """Plain-JAX reference with the kernel's matmul numerics (bf16 operands,
    f32 accumulation, f32 bias/ReLU/tanh); f32 result (no final bf16 cast)."""
    def lin(h, w, b):
        return jnp.dot(h.astype(jnp.bfloat16), w.astype(jnp.bfloat16),
                       preferred_element_type=jnp.float32) + b
    h = jnp.maximum(lin(x, params["w1"], params["b1"]), 0.0)
    h = jnp.maximum(lin(h, params["w2"], params["b2"]), 0.0)
    h = jnp.maximum(lin(h, params["w3"], params["b3"]), 0.0)
    return jnp.tanh(lin(h, params["w4"], params["b4"]))


if __name__ == "__main__":
    latent_dim = 32
    output_dim = 64
    batch = 8

    key = jax.random.PRNGKey(0)
    key, kx = jax.random.split(key)
    x = jax.random.normal(kx, (batch, latent_dim), dtype=jnp.float32)

    params = init_params(key, latent_dim, output_dim)
    packed = pack_params(params, latent_dim, output_dim)

    out = decoder_forward(x, packed, output_dim)
    out = jax.block_until_ready(out)
    assert out.shape == (batch, output_dim)
    assert out.dtype == jnp.bfloat16
    out_f32 = out.astype(jnp.float32)

    # Check against a reference with the kernel's mixed-precision matmuls
    # (tolerance covers the final bf16 output rounding, <= ~4e-3 on [-1,1]).
    ref_mixed = decoder_reference_mixed(x, params)
    assert jnp.allclose(out_f32, ref_mixed, atol=1e-2, rtol=1e-2), \
        "mismatch vs mixed-precision reference"

    # Sanity check against the full-f32 PyTorch-equivalent forward
    # (bf16 weight/activation/output quantization; tanh output in [-1, 1]).
    ref_f32 = decoder_reference_f32(x, params)
    assert jnp.allclose(out_f32, ref_f32, atol=3e-2, rtol=3e-2), \
        "mismatch vs f32 reference"

    print("KERNEL_OK")
</pallas_src>

<mosaic_0001>
module attributes {stable_mosaic.version = 11 : i64} {
  func.func @decoder_kernel(%arg0: i32, %arg1: memref<16x32xbf16, #tpu.memory_space<vmem>>, %arg2: memref<32x768xbf16, #tpu.memory_space<vmem>>, %arg3: memref<1x768xf32, #tpu.memory_space<vmem>>, %arg4: memref<768x512xbf16, #tpu.memory_space<vmem>>, %arg5: memref<1x512xf32, #tpu.memory_space<vmem>>, %arg6: memref<512x256xbf16, #tpu.memory_space<vmem>>, %arg7: memref<1x256xf32, #tpu.memory_space<vmem>>, %arg8: memref<256x128xbf16, #tpu.memory_space<vmem>>, %arg9: memref<1x128xf32, #tpu.memory_space<vmem>>, %arg10: memref<16x128xbf16, #tpu.memory_space<vmem>>) attributes {dimension_semantics = [#tpu.dimension_semantics<parallel>], iteration_bounds = array<i64: 1>, scalar_prefetch = 0 : i64, scratch_operands = 0 : i64, tpu.core_type = #tpu.core_type<tc>, window_params = [{transform_indices = @transform_0, window_bounds = array<i64: 16, 32>}, {pipeline_mode = #tpu.pipeline_mode<synchronous>, transform_indices = @transform_1, window_bounds = array<i64: 32, 768>}, {pipeline_mode = #tpu.pipeline_mode<synchronous>, transform_indices = @transform_2, window_bounds = array<i64: 1, 768>}, {pipeline_mode = #tpu.pipeline_mode<synchronous>, transform_indices = @transform_3, window_bounds = array<i64: 768, 512>}, {pipeline_mode = #tpu.pipeline_mode<synchronous>, transform_indices = @transform_4, window_bounds = array<i64: 1, 512>}, {pipeline_mode = #tpu.pipeline_mode<synchronous>, transform_indices = @transform_5, window_bounds = array<i64: 512, 256>}, {pipeline_mode = #tpu.pipeline_mode<synchronous>, transform_indices = @transform_6, window_bounds = array<i64: 1, 256>}, {pipeline_mode = #tpu.pipeline_mode<synchronous>, transform_indices = @transform_7, window_bounds = array<i64: 256, 128>}, {pipeline_mode = #tpu.pipeline_mode<synchronous>, transform_indices = @transform_8, window_bounds = array<i64: 1, 128>}, {transform_indices = @transform_9, window_bounds = array<i64: 16, 128>}]} {
    %c0 = arith.constant 0 : index
    %c0_0 = arith.constant 0 : index
    %0 = vector.load %arg1[%c0, %c0_0] : memref<16x32xbf16, #tpu.memory_space<vmem>>, vector<16x32xbf16>
    %c0_1 = arith.constant 0 : index
    %c0_2 = arith.constant 0 : index
    %1 = vector.load %arg2[%c0_1, %c0_2] : memref<32x768xbf16, #tpu.memory_space<vmem>>, vector<32x768xbf16>
    %cst = arith.constant dense<0.000000e+00> : vector<16x768xf32>
    %2 = tpu.matmul %0, %1, %cst {dimension_numbers = #tpu.dot_dimension_numbers<[1], [0], [0], [1], [0, 0, 1, 1], [], []>} : vector<16x32xbf16>, vector<32x768xbf16>, vector<16x768xf32> -> vector<16x768xf32>
    %c0_3 = arith.constant 0 : index
    %c0_4 = arith.constant 0 : index
    %3 = vector.load %arg3[%c0_3, %c0_4] : memref<1x768xf32, #tpu.memory_space<vmem>>, vector<1x768xf32>
    %4 = vector.broadcast %3 : vector<1x768xf32> to vector<16x768xf32>
    %5 = arith.addf %2, %4 : vector<16x768xf32>
    %cst_5 = arith.constant 0.000000e+00 : f32
    %6 = vector.broadcast %cst_5 : f32 to vector<16x768xf32>
    %7 = arith.maximumf %5, %6 : vector<16x768xf32>
    %8 = arith.truncf %7 : vector<16x768xf32> to vector<16x768xbf16>
    %c0_6 = arith.constant 0 : index
    %c0_7 = arith.constant 0 : index
    %9 = vector.load %arg4[%c0_6, %c0_7] : memref<768x512xbf16, #tpu.memory_space<vmem>>, vector<768x512xbf16>
    %cst_8 = arith.constant dense<0.000000e+00> : vector<16x512xf32>
    %10 = tpu.matmul %8, %9, %cst_8 {dimension_numbers = #tpu.dot_dimension_numbers<[1], [0], [0], [1], [0, 0, 1, 1], [], []>} : vector<16x768xbf16>, vector<768x512xbf16>, vector<16x512xf32> -> vector<16x512xf32>
    %c0_9 = arith.constant 0 : index
    %c0_10 = arith.constant 0 : index
    %11 = vector.load %arg5[%c0_9, %c0_10] : memref<1x512xf32, #tpu.memory_space<vmem>>, vector<1x512xf32>
    %12 = vector.broadcast %11 : vector<1x512xf32> to vector<16x512xf32>
    %13 = arith.addf %10, %12 : vector<16x512xf32>
    %cst_11 = arith.constant 0.000000e+00 : f32
    %14 = vector.broadcast %cst_11 : f32 to vector<16x512xf32>
    %15 = arith.maximumf %13, %14 : vector<16x512xf32>
    %16 = arith.truncf %15 : vector<16x512xf32> to vector<16x512xbf16>
    %c0_12 = arith.constant 0 : index
    %c0_13 = arith.constant 0 : index
    %17 = vector.load %arg6[%c0_12, %c0_13] : memref<512x256xbf16, #tpu.memory_space<vmem>>, vector<512x256xbf16>
    %cst_14 = arith.constant dense<0.000000e+00> : vector<16x256xf32>
    %18 = tpu.matmul %16, %17, %cst_14 {dimension_numbers = #tpu.dot_dimension_numbers<[1], [0], [0], [1], [0, 0, 1, 1], [], []>} : vector<16x512xbf16>, vector<512x256xbf16>, vector<16x256xf32> -> vector<16x256xf32>
    %c0_15 = arith.constant 0 : index
    %c0_16 = arith.constant 0 : index
    %19 = vector.load %arg7[%c0_15, %c0_16] : memref<1x256xf32, #tpu.memory_space<vmem>>, vector<1x256xf32>
    %20 = vector.broadcast %19 : vector<1x256xf32> to vector<16x256xf32>
    %21 = arith.addf %18, %20 : vector<16x256xf32>
    %cst_17 = arith.constant 0.000000e+00 : f32
    %22 = vector.broadcast %cst_17 : f32 to vector<16x256xf32>
    %23 = arith.maximumf %21, %22 : vector<16x256xf32>
    %24 = arith.truncf %23 : vector<16x256xf32> to vector<16x256xbf16>
    %c0_18 = arith.constant 0 : index
    %c0_19 = arith.constant 0 : index
    %25 = vector.load %arg8[%c0_18, %c0_19] : memref<256x128xbf16, #tpu.memory_space<vmem>>, vector<256x128xbf16>
    %cst_20 = arith.constant dense<0.000000e+00> : vector<16x128xf32>
    %26 = tpu.matmul %24, %25, %cst_20 {dimension_numbers = #tpu.dot_dimension_numbers<[1], [0], [0], [1], [0, 0, 1, 1], [], []>} : vector<16x256xbf16>, vector<256x128xbf16>, vector<16x128xf32> -> vector<16x128xf32>
    %c0_21 = arith.constant 0 : index
    %c0_22 = arith.constant 0 : index
    %27 = vector.load %arg9[%c0_21, %c0_22] : memref<1x128xf32, #tpu.memory_space<vmem>>, vector<1x128xf32>
    %28 = vector.broadcast %27 : vector<1x128xf32> to vector<16x128xf32>
    %29 = arith.addf %26, %28 : vector<16x128xf32>
    %30 = math.tanh %29 : vector<16x128xf32>
    %31 = arith.truncf %30 : vector<16x128xf32> to vector<16x128xbf16>
    %c0_23 = arith.constant 0 : index
    %c0_24 = arith.constant 0 : index
    %32 = vector.load %arg10[%c0_23, %c0_24] : memref<16x128xbf16, #tpu.memory_space<vmem>>, vector<16x128xbf16>
    tpu.vector_store %arg10[%c0_23, %c0_24], %31 {strides = array<i32>} : memref<16x128xbf16, #tpu.memory_space<vmem>>, vector<16x128xbf16>,
    return
  }
  func.func @transform_0(%arg0: i32) -> (i32, i32) {
    %c0_i32 = arith.constant 0 : i32
    %c0_i32_0 = arith.constant 0 : i32
    return %arg0, %c0_i32 : i32, i32
  }
  func.func @transform_1(%arg0: i32) -> (i32, i32) {
    %c0_i32 = arith.constant 0 : i32
    %c0_i32_0 = arith.constant 0 : i32
    %c0_i32_1 = arith.constant 0 : i32
    return %c0_i32, %c0_i32_0 : i32, i32
  }
  func.func @transform_2(%arg0: i32) -> (i32, i32) {
    %c0_i32 = arith.constant 0 : i32
    %c0_i32_0 = arith.constant 0 : i32
    %c0_i32_1 = arith.constant 0 : i32
    return %c0_i32, %c0_i32_0 : i32, i32
  }
  func.func @transform_3(%arg0: i32) -> (i32, i32) {
    %c0_i32 = arith.constant 0 : i32
    %c0_i32_0 = arith.constant 0 : i32
    %c0_i32_1 = arith.constant 0 : i32
    return %c0_i32, %c0_i32_0 : i32, i32
  }
  func.func @transform_4(%arg0: i32) -> (i32, i32) {
    %c0_i32 = arith.constant 0 : i32
    %c0_i32_0 = arith.constant 0 : i32
    %c0_i32_1 = arith.constant 0 : i32
    return %c0_i32, %c0_i32_0 : i32, i32
  }
  func.func @transform_5(%arg0: i32) -> (i32, i32) {
    %c0_i32 = arith.constant 0 : i32
    %c0_i32_0 = arith.constant 0 : i32
    %c0_i32_1 = arith.constant 0 : i32
    return %c0_i32, %c0_i32_0 : i32, i32
  }
  func.func @transform_6(%arg0: i32) -> (i32, i32) {
    %c0_i32 = arith.constant 0 : i32
    %c0_i32_0 = arith.constant 0 : i32
    %c0_i32_1 = arith.constant 0 : i32
    return %c0_i32, %c0_i32_0 : i32, i32
  }
  func.func @transform_7(%arg0: i32) -> (i32, i32) {
    %c0_i32 = arith.constant 0 : i32
    %c0_i32_0 = arith.constant 0 : i32
    %c0_i32_1 = arith.constant 0 : i32
    return %c0_i32, %c0_i32_0 : i32, i32
  }
  func.func @transform_8(%arg0: i32) -> (i32, i32) {
    %c0_i32 = arith.constant 0 : i32
    %c0_i32_0 = arith.constant 0 : i32
    %c0_i32_1 = arith.constant 0 : i32
    return %c0_i32, %c0_i32_0 : i32, i32
  }
  func.func @transform_9(%arg0: i32) -> (i32, i32) {
    %c0_i32 = arith.constant 0 : i32
    %c0_i32_0 = arith.constant 0 : i32
    return %arg0, %c0_i32 : i32, i32
  }
}

</mosaic_0001>

<llo_original>
// kernel: decoder_forward.1
$region0: #{decoder_forward.1}
  #allocation0 [shape = 'u32[]', space=smem, size = 0x4, offset = 0x4, fixed_abs, tag = 'smem constant byte address 0x4 - core index']
  #allocation1 [shape = 'u32[144,128]{1,0:T(1,128)}', space=vmem, size = 0x12000, scoped, tag = 'internal scratch']
  %s0 = inlined_call_operand.vmem [shape: bf16[16,32], index: 0, kind: input, shape index: {}]
  %s1 = inlined_call_operand.hbm [shape: bf16[32,768], index: 1, kind: input, shape index: {}]
  %s2 = inlined_call_operand.vmem [shape: f32[1,768], index: 2, kind: input, shape index: {}]
  %s3 = inlined_call_operand.hbm [shape: bf16[768,512], index: 3, kind: input, shape index: {}]
  %s4 = inlined_call_operand.vmem [shape: f32[1,512], index: 4, kind: input, shape index: {}]
  %s5 = inlined_call_operand.hbm [shape: bf16[512,256], index: 5, kind: input, shape index: {}]
  %s6 = inlined_call_operand.vmem [shape: f32[1,256], index: 6, kind: input, shape index: {}]
  %s7 = inlined_call_operand.hbm [shape: bf16[256,128], index: 7, kind: input, shape index: {}]
  %s8 = inlined_call_operand.vmem [shape: f32[1,128], index: 8, kind: input, shape index: {}]
  %s9 = inlined_call_operand.vmem [shape: bf16[16,128], index: 9, kind: output, shape index: {}]
  %s10 = sld [smem:[#allocation0]]
  $region62: #{decoder_forward.1} parent=0
    _
  %s12 = ssub.s32 1, %s10
  %s13 = scalar_select 0, %s12, %s10
  $region1: #{decoder_forward.1} parent=0
    #allocation2 [shape = 'u8[49152]{0}', space=vmem, size = 0xc000, scoped, tag = 'input window, operand 1, single buffered']
    #allocation3 [shape = 's32[1]{0}', space=sflag, size = 0x4, scoped, tag = 'scoped memory for decoder_forward.1']
    #allocation4 [shape = 'u8[786432]{0}', space=vmem, size = 0xc0000, scoped, tag = 'input window, operand 3, single buffered']
    #allocation5 [shape = 's32[1]{0}', space=sflag, size = 0x4, scoped, tag = 'scoped memory for decoder_forward.1']
    #allocation6 [shape = 'u8[262144]{0}', space=vmem, size = 0x40000, scoped, tag = 'input window, operand 5, single buffered']
    #allocation7 [shape = 'u8[65536]{0}', space=vmem, size = 0x10000, scoped, tag = 'input window, operand 7, single buffered']
    #allocation8 [shape = 's32[1]{0}', space=sflag, size = 0x4, scoped, tag = 'scoped memory for decoder_forward.1']
    %14 = vsyncpa [#allocation3], 0
    %15 = vsyncpa [#allocation5], 0
    %16 = vsyncpa [#allocation8], 0
    // Predicated region
    $region2: #{decoder_forward.1} parent=1 // pred_check
      _
    $region3: #{decoder_forward.1} parent=1 // pred_check_branch
      %18 = sbr.rel (0) target = $region5
    $region4: #{decoder_forward.1} parent=1 // pred_region
      _
    $region5: #{decoder_forward.1} parent=1 // pred_fallthru
      _
    // Predicated region
    $region6: #{decoder_forward.1} parent=1 // pred_check
      _
    $region7: #{decoder_forward.1} parent=1 // pred_check_branch
      %20 = sbr.rel (0) target = $region9
    $region8: #{decoder_forward.1} parent=1 // pred_region
      %s22 = ssub.s32 1536, 1536
      %23 = vsyncadd [#allocation3], %s22
      %s24 = sshll.u32 [#allocation2], 4
      %s25 = int_to_ptr.vmem [resolvable:$true] %s24
      %30 = dma.hbm_to_vmem [thread:$0]  %s1, 1536, %s25, [#allocation3], 384, 384, 24
    $region9: #{decoder_forward.1} parent=1 // pred_fallthru
      _
    // Predicated region
    $region10: #{decoder_forward.1} parent=1 // pred_check
      _
    $region11: #{decoder_forward.1} parent=1 // pred_check_branch
      %32 = sbr.rel (0) target = $region13
    $region12: #{decoder_forward.1} parent=1 // pred_region
      _
    $region13: #{decoder_forward.1} parent=1 // pred_fallthru
      _
    // Predicated region
    $region14: #{decoder_forward.1} parent=1 // pred_check
      _
    $region15: #{decoder_forward.1} parent=1 // pred_check_branch
      %34 = sbr.rel (0) target = $region17
    $region16: #{decoder_forward.1} parent=1 // pred_region
      %s36 = ssub.s32 24576, 24576
      %37 = vsyncadd [#allocation5], %s36
      %s38 = sshll.u32 [#allocation4], 4
      %s39 = int_to_ptr.vmem [resolvable:$true] %s38
      %44 = dma.hbm_to_vmem [thread:$0]  %s3, 24576, %s39, [#allocation5], 256, 256, 16
    $region17: #{decoder_forward.1} parent=1 // pred_fallthru
      _
    // Predicated region
    $region18: #{decoder_forward.1} parent=1 // pred_check
      _
    $region19: #{decoder_forward.1} parent=1 // pred_check_branch
      %46 = sbr.rel (0) target = $region21
    $region20: #{decoder_forward.1} parent=1 // pred_region
      _
    $region21: #{decoder_forward.1} parent=1 // pred_fallthru
      _
    // Predicated region
    $region22: #{decoder_forward.1} parent=1 // pred_check
      _
    $region23: #{decoder_forward.1} parent=1 // pred_check_branch
      %48 = sbr.rel (0) target = $region25
    $region24: #{decoder_forward.1} parent=1 // pred_region
      %s50 = ssub.s32 8192, 8192
      %51 = vsyncadd [#allocation5], %s50
      %s52 = sshll.u32 [#allocation6], 4
      %s53 = int_to_ptr.vmem [resolvable:$true] %s52
      %58 = dma.hbm_to_vmem [thread:$0]  %s5, 8192, %s53, [#allocation5], 128, 128, 8
    $region25: #{decoder_forward.1} parent=1 // pred_fallthru
      _
    // Predicated region
    $region26: #{decoder_forward.1} parent=1 // pred_check
      _
    $region27: #{decoder_forward.1} parent=1 // pred_check_branch
      %60 = sbr.rel (0) target = $region29
    $region28: #{decoder_forward.1} parent=1 // pred_region
      _
    $region29: #{decoder_forward.1} parent=1 // pred_fallthru
      _
    // Predicated region
    $region30: #{decoder_forward.1} parent=1 // pred_check
      _
    $region31: #{decoder_forward.1} parent=1 // pred_check_branch
      %62 = sbr.rel (0) target = $region33
    $region32: #{decoder_forward.1} parent=1 // pred_region
      %s64 = ssub.s32 2048, 2048
      %65 = vsyncadd [#allocation8], %s64
      %s66 = sshll.u32 [#allocation7], 4
      %s67 = int_to_ptr.vmem [resolvable:$true] %s66
      %72 = dma.hbm_to_vmem [thread:$0]  %s7, 2048, %s67, [#allocation8], 64, 64, 4
    $region33: #{decoder_forward.1} parent=1 // pred_fallthru
      _
    // Predicated region
    $region34: #{decoder_forward.1} parent=1 // pred_check
      _
    $region35: #{decoder_forward.1} parent=1 // pred_check_branch
      %74 = sbr.rel (0) target = $region37
    $region36: #{decoder_forward.1} parent=1 // pred_region
      _
    $region37: #{decoder_forward.1} parent=1 // pred_fallthru
      _
    // Predicated region
    $region38: #{decoder_forward.1} parent=1 // pred_check
      _
    $region39: #{decoder_forward.1} parent=1 // pred_check_branch
      %76 = sbr.rel (0) target = $region41
    $region40: #{decoder_forward.1} parent=1 // pred_region
      %77 = dma.done [#allocation3], 1536
    $region41: #{decoder_forward.1} parent=1 // pred_fallthru
      _
    // Predicated region
    $region42: #{decoder_forward.1} parent=1 // pred_check
      _
    $region43: #{decoder_forward.1} parent=1 // pred_check_branch
      %79 = sbr.rel (0) target = $region45
    $region44: #{decoder_forward.1} parent=1 // pred_region
      %80 = dma.done [#allocation5], 24576
    $region45: #{decoder_forward.1} parent=1 // pred_fallthru
      _
    // Predicated region
    $region46: #{decoder_forward.1} parent=1 // pred_check
      _
    $region47: #{decoder_forward.1} parent=1 // pred_check_branch
      %82 = sbr.rel (0) target = $region49
    $region48: #{decoder_forward.1} parent=1 // pred_region
      %83 = dma.done [#allocation5], 8192
    $region49: #{decoder_forward.1} parent=1 // pred_fallthru
      _
    // Predicated region
    $region50: #{decoder_forward.1} parent=1 // pred_check
      _
    $region51: #{decoder_forward.1} parent=1 // pred_check_branch
      %85 = sbr.rel (0) target = $region53
    $region52: #{decoder_forward.1} parent=1 // pred_region
      %86 = dma.done [#allocation8], 2048
    $region53: #{decoder_forward.1} parent=1 // pred_fallthru
      _
    %v88 = vld [vmem:[%s0] sm:$0xf]
    %v89 = vld [vmem:[%s0 + $0x4] sm:$0xf]
    %v90 = vld [vmem:[#allocation2] sm:$0xff]
    %v91 = vld [vmem:[#allocation2 + $0x8] sm:$0xff]
    %v92 = vld [vmem:[#allocation2 + $0x10] sm:$0xff]
    %v93 = vld [vmem:[#allocation2 + $0x18] sm:$0xff]
    %v94 = vld [vmem:[#allocation2 + $0x20] sm:$0xff]
    %v95 = vld [vmem:[#allocation2 + $0x28] sm:$0xff]
    %v96 = vld [vmem:[#allocation2 + $0x30] sm:$0xff]
    %v97 = vld [vmem:[#allocation2 + $0x38] sm:$0xff]
    %v98 = vld [vmem:[#allocation2 + $0x40] sm:$0xff]
    %v99 = vld [vmem:[#allocation2 + $0x48] sm:$0xff]
    %v100 = vld [vmem:[#allocation2 + $0x50] sm:$0xff]
    %v101 = vld [vmem:[#allocation2 + $0x58] sm:$0xff]
    %v102 = vld [vmem:[%s2] sm:$0x3f]
    %v104 = vlaneseq
    %v105 = vshrl.u32 %v104, 7
    %v106 = vsub.s32 0, %v105
    %v107 = vrot.slane %v102, %v106
    %v108 = vlaneseq
    %v109 = vshrl.u32 %v108, 7
    %v110 = vsub.s32 1, %v109
    %v111 = vrot.slane %v102, %v110
    %v112 = vlaneseq
    %v113 = vshrl.u32 %v112, 7
    %v114 = vsub.s32 2, %v113
    %v115 = vrot.slane %v102, %v114
    %v116 = vlaneseq
    %v117 = vshrl.u32 %v116, 7
    %v118 = vsub.s32 3, %v117
    %v119 = vrot.slane %v102, %v118
    %v120 = vlaneseq
    %v121 = vshrl.u32 %v120, 7
    %v122 = vsub.s32 4, %v121
    %v123 = vrot.slane %v102, %v122
    %v124 = vlaneseq
    %v125 = vshrl.u32 %v124, 7
    %v126 = vsub.s32 5, %v125
    %v127 = vrot.slane %v102, %v126
    %v136 = vunpack.c.l.b16 %v88
    %v137 = vunpack.c.l.b16 %v89
    %v138 = vpack.c.b16 %v137, %v136
    %v151 = vunpack.c.l.b16 %v90
    %v152 = vunpack.c.h.b16 %v90
    %v153 = vunpack.c.l.b16 %v91
    %v154 = vunpack.c.h.b16 %v91
    %v155 = vunpack.c.l.b16 %v92
    %v156 = vunpack.c.h.b16 %v92
    %v157 = vunpack.c.l.b16 %v93
    %v158 = vunpack.c.h.b16 %v93
    %v159 = vunpack.c.l.b16 %v94
    %v160 = vunpack.c.h.b16 %v94
    %v161 = vunpack.c.l.b16 %v95
    %v162 = vunpack.c.h.b16 %v95
    %v163 = vunpack.c.l.b16 %v96
    %v164 = vunpack.c.h.b16 %v96
    %v165 = vunpack.c.l.b16 %v97
    %v166 = vunpack.c.h.b16 %v97
    %v167 = vunpack.c.l.b16 %v98
    %v168 = vunpack.c.h.b16 %v98
    %v169 = vunpack.c.l.b16 %v99
    %v170 = vunpack.c.h.b16 %v99
    %v171 = vunpack.c.l.b16 %v100
    %v172 = vunpack.c.h.b16 %v100
    %v173 = vunpack.c.l.b16 %v101
    %v174 = vunpack.c.h.b16 %v101
    %v175 = vpack.c.b16 %v157, %v151
    %v176 = vpack.c.b16 %v158, %v152
    %v177 = vpack.c.b16 %v159, %v153
    %v178 = vpack.c.b16 %v160, %v154
    %v179 = vpack.c.b16 %v161, %v155
    %v180 = vpack.c.b16 %v162, %v156
    %v181 = vpack.c.b16 %v169, %v163
    %v182 = vpack.c.b16 %v170, %v164
    %v183 = vpack.c.b16 %v171, %v165
    %v184 = vpack.c.b16 %v172, %v166
    %v185 = vpack.c.b16 %v173, %v167
    %v186 = vpack.c.b16 %v174, %v168
    %vm199 = vcmask 261120
    %v201 = vsel %vm199, %v138, 0
    %203 = vmatprep.subr.bf16.mxu0 %v176
    %204 = vmatpush1.bf16.msra.mxu0 %v175
    %205 = vmatprep.subr.bf16.mxu0 %v182
    %206 = vmatpush1.bf16.msra.mxu0 %v181
    %207 = vmatprep.subr.bf16.mxu0 0
    %208 = vmatpush1.bf16.msra.mxu0 0
    %209 = vmatprep.subr.bf16.mxu0 0
    %210 = vmatpush1.bf16.msra.mxu0 0
    %211 = vmatprep.subr.bf16.mxu0 0
    %212 = vmatpush1.bf16.msra.mxu0 0
    %213 = vmatprep.subr.bf16.mxu0 0
    %214 = vmatpush1.bf16.msra.mxu0 0
    %215 = vmatprep.subr.bf16.mxu0 0
    %216 = vmatpush1.bf16.msra.mxu0 0
    %217 = vmatprep.subr.bf16.mxu0 0
    %218 = vmatpush1.bf16.msra.mxu0 0
    %219 = vmatprep.subr.bf16.mxu0 0
    %220 = vmatpush1.bf16.msra.mxu0 0
    %221 = vmatprep.subr.bf16.mxu0 0
    %222 = vmatpush1.bf16.msra.mxu0 0
    %223 = vmatprep.subr.bf16.mxu0 0
    %224 = vmatpush1.bf16.msra.mxu0 0
    %225 = vmatprep.subr.bf16.mxu0 0
    %226 = vmatpush1.bf16.msra.mxu0 0
    %227 = vmatprep.subr.bf16.mxu0 0
    %228 = vmatpush1.bf16.msra.mxu0 0
    %229 = vmatprep.subr.bf16.mxu0 0
    %230 = vmatpush1.bf16.msra.mxu0 0
    %231 = vmatprep.subr.bf16.mxu0 0
    %232 = vmatpush1.bf16.msra.mxu0 0
    %233 = vmatprep.subr.bf16.mxu0 0
    %234 = vmatpush1.bf16.msra.mxu0 0
    %235 = vmatprep.mubr.bf16.mxu0 0
    %236 = vmatmul.mubr.bf16.gmra.mrb[0].mxu0 %v201
    %v237 = vpop.f32.mrb[0].mxu0
    %v238 = vadd.f32 %v107, %v237
    %v239 = vpop.f32.mrb[0].mxu0
    %v240 = vadd.f32 %v111, %v239
    %v241 = vpop.f32.mrb[0].mxu0
    %v242 = vadd.f32 %v107, %v241
    %v243 = vpop.f32.mrb[0].mxu0
    %v244 = vadd.f32 %v111, %v243
    %245 = vdwg.mxu0
    %246 = vmatprep.subr.bf16.mxu0 %v178
    %247 = vmatpush1.bf16.msra.mxu0 %v177
    %248 = vmatprep.subr.bf16.mxu0 %v184
    %249 = vmatpush1.bf16.msra.mxu0 %v183
    %250 = vmatprep.subr.bf16.mxu0 0
    %251 = vmatpush1.bf16.msra.mxu0 0
    %252 = vmatprep.subr.bf16.mxu0 0
    %253 = vmatpush1.bf16.msra.mxu0 0
    %254 = vmatprep.subr.bf16.mxu0 0
    %255 = vmatpush1.bf16.msra.mxu0 0
    %256 = vmatprep.subr.bf16.mxu0 0
    %257 = vmatpush1.bf16.msra.mxu0 0
    %258 = vmatprep.subr.bf16.mxu0 0
    %259 = vmatpush1.bf16.msra.mxu0 0
    %260 = vmatprep.subr.bf16.mxu0 0
    %261 = vmatpush1.bf16.msra.mxu0 0
    %262 = vmatprep.subr.bf16.mxu0 0
    %263 = vmatpush1.bf16.msra.mxu0 0
    %264 = vmatprep.subr.bf16.mxu0 0
    %265 = vmatpush1.bf16.msra.mxu0 0
    %266 = vmatprep.subr.bf16.mxu0 0
    %267 = vmatpush1.bf16.msra.mxu0 0
    %268 = vmatprep.subr.bf16.mxu0 0
    %269 = vmatpush1.bf16.msra.mxu0 0
    %270 = vmatprep.subr.bf16.mxu0 0
    %271 = vmatpush1.bf16.msra.mxu0 0
    %272 = vmatprep.subr.bf16.mxu0 0
    %273 = vmatpush1.bf16.msra.mxu0 0
    %274 = vmatprep.subr.bf16.mxu0 0
    %275 = vmatpush1.bf16.msra.mxu0 0
    %276 = vmatprep.subr.bf16.mxu0 0
    %277 = vmatpush1.bf16.msra.mxu0 0
    %278 = vmatprep.mubr.bf16.mxu0 0
    %279 = vmatmul.mubr.bf16.gmra.mrb[0].mxu0 %v201
    %v280 = vpop.f32.mrb[0].mxu0
    %v281 = vadd.f32 %v115, %v280
    %v282 = vpop.f32.mrb[0].mxu0
    %v283 = vadd.f32 %v119, %v282
    %v284 = vpop.f32.mrb[0].mxu0
    %v285 = vadd.f32 %v115, %v284
    %v286 = vpop.f32.mrb[0].mxu0
    %v287 = vadd.f32 %v119, %v286
    %288 = vdwg.mxu0
    %289 = vmatprep.subr.bf16.mxu0 %v180
    %290 = vmatpush1.bf16.msra.mxu0 %v179
    %291 = vmatprep.subr.bf16.mxu0 %v186
    %292 = vmatpush1.bf16.msra.mxu0 %v185
    %293 = vmatprep.subr.bf16.mxu0 0
    %294 = vmatpush1.bf16.msra.mxu0 0
    %295 = vmatprep.subr.bf16.mxu0 0
    %296 = vmatpush1.bf16.msra.mxu0 0
    %297 = vmatprep.subr.bf16.mxu0 0
    %298 = vmatpush1.bf16.msra.mxu0 0
    %299 = vmatprep.subr.bf16.mxu0 0
    %300 = vmatpush1.bf16.msra.mxu0 0
    %301 = vmatprep.subr.bf16.mxu0 0
    %302 = vmatpush1.bf16.msra.mxu0 0
    %303 = vmatprep.subr.bf16.mxu0 0
    %304 = vmatpush1.bf16.msra.mxu0 0
    %305 = vmatprep.subr.bf16.mxu0 0
    %306 = vmatpush1.bf16.msra.mxu0 0
    %307 = vmatprep.subr.bf16.mxu0 0
    %308 = vmatpush1.bf16.msra.mxu0 0
    %309 = vmatprep.subr.bf16.mxu0 0
    %310 = vmatpush1.bf16.msra.mxu0 0
    %311 = vmatprep.subr.bf16.mxu0 0
    %312 = vmatpush1.bf16.msra.mxu0 0
    %313 = vmatprep.subr.bf16.mxu0 0
    %314 = vmatpush1.bf16.msra.mxu0 0
    %315 = vmatprep.subr.bf16.mxu0 0
    %316 = vmatpush1.bf16.msra.mxu0 0
    %317 = vmatprep.subr.bf16.mxu0 0
    %318 = vmatpush1.bf16.msra.mxu0 0
    %319 = vmatprep.subr.bf16.mxu0 0
    %320 = vmatpush1.bf16.msra.mxu0 0
    %321 = vmatprep.mubr.bf16.mxu0 0
    %322 = vmatmul.mubr.bf16.gmra.mrb[0].mxu0 %v201
    %v323 = vpop.f32.mrb[0].mxu0
    %v324 = vadd.f32 %v123, %v323
    %v325 = vpop.f32.mrb[0].mxu0
    %v326 = vadd.f32 %v127, %v325
    %v327 = vpop.f32.mrb[0].mxu0
    %v328 = vadd.f32 %v123, %v327
    %v329 = vpop.f32.mrb[0].mxu0
    %v330 = vadd.f32 %v127, %v329
    %331 = vdwg.mxu0
    %v332 = vmax.f32 %v238, 0.0
    %v333 = vmax.f32 %v240, 0.0
    %v334 = vmax.f32 %v281, 0.0
    %v335 = vmax.f32 %v283, 0.0
    %v336 = vmax.f32 %v324, 0.0
    %v337 = vmax.f32 %v326, 0.0
    %v338 = vmax.f32 %v242, 0.0
    %v339 = vmax.f32 %v244, 0.0
    %v340 = vmax.f32 %v285, 0.0
    %v341 = vmax.f32 %v287, 0.0
    %v342 = vmax.f32 %v328, 0.0
    %v343 = vmax.f32 %v330, 0.0
    %v344 = vpack.c.bf16 %v338, %v332
    %v345 = vpack.c.bf16 %v339, %v333
    %v346 = vpack.c.bf16 %v340, %v334
    %v347 = vpack.c.bf16 %v341, %v335
    %v348 = vpack.c.bf16 %v342, %v336
    %v349 = vpack.c.bf16 %v343, %v337
    %v350 = vld [vmem:[#allocation4] sm:$0xff]
    %v351 = vld [vmem:[#allocation4 + $0x8] sm:$0xff]
    %v352 = vld [vmem:[#allocation4 + $0x10] sm:$0xff]
    %v353 = vld [vmem:[#allocation4 + $0x18] sm:$0xff]
    %v354 = vld [vmem:[#allocation4 + $0x20] sm:$0xff]
    %v355 = vld [vmem:[#allocation4 + $0x28] sm:$0xff]
    %v356 = vld [vmem:[#allocation4 + $0x30] sm:$0xff]
    %v357 = vld [vmem:[#allocation4 + $0x38] sm:$0xff]
    %v358 = vld [vmem:[#allocation4 + $0x40] sm:$0xff]
    %v359 = vld [vmem:[#allocation4 + $0x48] sm:$0xff]
    %v360 = vld [vmem:[#allocation4 + $0x50] sm:$0xff]
    %v361 = vld [vmem:[#allocation4 + $0x58] sm:$0xff]
    %v362 = vld [vmem:[#allocation4 + $0x60] sm:$0xff]
    %v363 = vld [vmem:[#allocation4 + $0x68] sm:$0xff]
    %v364 = vld [vmem:[#allocation4 + $0x70] sm:$0xff]
    %v365 = vld [vmem:[#allocation4 + $0x78] sm:$0xff]
    %v366 = vld [vmem:[#allocation4 + $0x80] sm:$0xff]
    %v367 = vld [vmem:[#allocation4 + $0x88] sm:$0xff]
    %v368 = vld [vmem:[#allocation4 + $0x90] sm:$0xff]
    %v369 = vld [vmem:[#allocation4 + $0x98] sm:$0xff]
    %v370 = vld [vmem:[#allocation4 + $0xa0] sm:$0xff]
    %v371 = vld [vmem:[#allocation4 + $0xa8] sm:$0xff]
    %v372 = vld [vmem:[#allocation4 + $0xb0] sm:$0xff]
    %v373 = vld [vmem:[#allocation4 + $0xb8] sm:$0xff]
    %v374 = vld [vmem:[#allocation4 + $0xc0] sm:$0xff]
    %v375 = vld [vmem:[#allocation4 + $0xc8] sm:$0xff]
    %v376 = vld [vmem:[#allocation4 + $0xd0] sm:$0xff]
    %v377 = vld [vmem:[#allocation4 + $0xd8] sm:$0xff]
    %v378 = vld [vmem:[#allocation4 + $0xe0] sm:$0xff]
    %v379 = vld [vmem:[#allocation4 + $0xe8] sm:$0xff]
    %v380 = vld [vmem:[#allocation4 + $0xf0] sm:$0xff]
    %v381 = vld [vmem:[#allocation4 + $0xf8] sm:$0xff]
    %v382 = vld [vmem:[#allocation4 + $0x100] sm:$0xff]
    %v383 = vld [vmem:[#allocation4 + $0x108] sm:$0xff]
    %v384 = vld [vmem:[#allocation4 + $0x110] sm:$0xff]
    %v385 = vld [vmem:[#allocation4 + $0x118] sm:$0xff]
    %v386 = vld [vmem:[#allocation4 + $0x120] sm:$0xff]
    %v387 = vld [vmem:[#allocation4 + $0x128] sm:$0xff]
    %v388 = vld [vmem:[#allocation4 + $0x130] sm:$0xff]
    %v389 = vld [vmem:[#allocation4 + $0x138] sm:$0xff]
    %v390 = vld [vmem:[#allocation4 + $0x140] sm:$0xff]
    %v391 = vld [vmem:[#allocation4 + $0x148] sm:$0xff]
    %v392 = vld [vmem:[#allocation4 + $0x150] sm:$0xff]
    %v393 = vld [vmem:[#allocation4 + $0x158] sm:$0xff]
    %v394 = vld [vmem:[#allocation4 + $0x160] sm:$0xff]
    %v395 = vld [vmem:[#allocation4 + $0x168] sm:$0xff]
    %v396 = vld [vmem:[#allocation4 + $0x170] sm:$0xff]
    %v397 = vld [vmem:[#allocation4 + $0x178] sm:$0xff]
    %v398 = vld [vmem:[#allocation4 + $0x180] sm:$0xff]
    %v399 = vld [vmem:[#allocation4 + $0x188] sm:$0xff]
    %v400 = vld [vmem:[#allocation4 + $0x190] sm:$0xff]
    %v401 = vld [vmem:[#allocation4 + $0x198] sm:$0xff]
    %v402 = vld [vmem:[#allocation4 + $0x1a0] sm:$0xff]
    %v403 = vld [vmem:[#allocation4 + $0x1a8] sm:$0xff]
    %v404 = vld [vmem:[#allocation4 + $0x1b0] sm:$0xff]
    %v405 = vld [vmem:[#allocation4 + $0x1b8] sm:$0xff]
    %v406 = vld [vmem:[#allocation4 + $0x1c0] sm:$0xff]
    %v407 = vld [vmem:[#allocation4 + $0x1c8] sm:$0xff]
    %v408 = vld [vmem:[#allocation4 + $0x1d0] sm:$0xff]
    %v409 = vld [vmem:[#allocation4 + $0x1d8] sm:$0xff]
    %v410 = vld [vmem:[#allocation4 + $0x1e0] sm:$0xff]
    %v411 = vld [vmem:[#allocation4 + $0x1e8] sm:$0xff]
    %v412 = vld [vmem:[#allocation4 + $0x1f0] sm:$0xff]
    %v413 = vld [vmem:[#allocation4 + $0x1f8] sm:$0xff]
    %v414 = vld [vmem:[#allocation4 + $0x200] sm:$0xff]
    %v415 = vld [vmem:[#allocation4 + $0x208] sm:$0xff]
    %v416 = vld [vmem:[#allocation4 + $0x210] sm:$0xff]
    %v417 = vld [vmem:[#allocation4 + $0x218] sm:$0xff]
    %v418 = vld [vmem:[#allocation4 + $0x220] sm:$0xff]
    %v419 = vld [vmem:[#allocation4 + $0x228] sm:$0xff]
    %v420 = vld [vmem:[#allocation4 + $0x230] sm:$0xff]
    %v421 = vld [vmem:[#allocation4 + $0x238] sm:$0xff]
    %v422 = vld [vmem:[#allocation4 + $0x240] sm:$0xff]
    %v423 = vld [vmem:[#allocation4 + $0x248] sm:$0xff]
    %v424 = vld [vmem:[#allocation4 + $0x250] sm:$0xff]
    %v425 = vld [vmem:[#allocation4 + $0x258] sm:$0xff]
    %v426 = vld [vmem:[#allocation4 + $0x260] sm:$0xff]
    %v427 = vld [vmem:[#allocation4 + $0x268] sm:$0xff]
    %v428 = vld [vmem:[#allocation4 + $0x270] sm:$0xff]
    %v429 = vld [vmem:[#allocation4 + $0x278] sm:$0xff]
    %v430 = vld [vmem:[#allocation4 + $0x280] sm:$0xff]
    %v431 = vld [vmem:[#allocation4 + $0x288] sm:$0xff]
    %v432 = vld [vmem:[#allocation4 + $0x290] sm:$0xff]
    %v433 = vld [vmem:[#allocation4 + $0x298] sm:$0xff]
    %v434 = vld [vmem:[#allocation4 + $0x2a0] sm:$0xff]
    %v435 = vld [vmem:[#allocation4 + $0x2a8] sm:$0xff]
    %v436 = vld [vmem:[#allocation4 + $0x2b0] sm:$0xff]
    %v437 = vld [vmem:[#allocation4 + $0x2b8] sm:$0xff]
    %v438 = vld [vmem:[#allocation4 + $0x2c0] sm:$0xff]
    %v439 = vld [vmem:[#allocation4 + $0x2c8] sm:$0xff]
    %v440 = vld [vmem:[#allocation4 + $0x2d0] sm:$0xff]
    %v441 = vld [vmem:[#allocation4 + $0x2d8] sm:$0xff]
    %v442 = vld [vmem:[#allocation4 + $0x2e0] sm:$0xff]
    %v443 = vld [vmem:[#allocation4 + $0x2e8] sm:$0xff]
    %v444 = vld [vmem:[#allocation4 + $0x2f0] sm:$0xff]
    %v445 = vld [vmem:[#allocation4 + $0x2f8] sm:$0xff]
    %v446 = vld [vmem:[#allocation4 + $0x300] sm:$0xff]
    %v447 = vld [vmem:[#allocation4 + $0x308] sm:$0xff]
    %v448 = vld [vmem:[#allocation4 + $0x310] sm:$0xff]
    %v449 = vld [vmem:[#allocation4 + $0x318] sm:$0xff]
    %v450 = vld [vmem:[#allocation4 + $0x320] sm:$0xff]
    %v451 = vld [vmem:[#allocation4 + $0x328] sm:$0xff]
    %v452 = vld [vmem:[#allocation4 + $0x330] sm:$0xff]
    %v453 = vld [vmem:[#allocation4 + $0x338] sm:$0xff]
    %v454 = vld [vmem:[#allocation4 + $0x340] sm:$0xff]
    %v455 = vld [vmem:[#allocation4 + $0x348] sm:$0xff]
    %v456 = vld [vmem:[#allocation4 + $0x350] sm:$0xff]
    %v457 = vld [vmem:[#allocation4 + $0x358] sm:$0xff]
    %v458 = vld [vmem:[#allocation4 + $0x360] sm:$0xff]
    %v459 = vld [vmem:[#allocation4 + $0x368] sm:$0xff]
    %v460 = vld [vmem:[#allocation4 + $0x370] sm:$0xff]
    %v461 = vld [vmem:[#allocation4 + $0x378] sm:$0xff]
    %v462 = vld [vmem:[#allocation4 + $0x380] sm:$0xff]
    %v463 = vld [vmem:[#allocation4 + $0x388] sm:$0xff]
    %v464 = vld [vmem:[#allocation4 + $0x390] sm:$0xff]
    %v465 = vld [vmem:[#allocation4 + $0x398] sm:$0xff]
    %v466 = vld [vmem:[#allocation4 + $0x3a0] sm:$0xff]
    %v467 = vld [vmem:[#allocation4 + $0x3a8] sm:$0xff]
    %v468 = vld [vmem:[#allocation4 + $0x3b0] sm:$0xff]
    %v469 = vld [vmem:[#allocation4 + $0x3b8] sm:$0xff]
    %v470 = vld [vmem:[#allocation4 + $0x3c0] sm:$0xff]
    %v471 = vld [vmem:[#allocation4 + $0x3c8] sm:$0xff]
    %v472 = vld [vmem:[#allocation4 + $0x3d0] sm:$0xff]
    %v473 = vld [vmem:[#allocation4 + $0x3d8] sm:$0xff]
    %v474 = vld [vmem:[#allocation4 + $0x3e0] sm:$0xff]
    %v475 = vld [vmem:[#allocation4 + $0x3e8] sm:$0xff]
    %v476 = vld [vmem:[#allocation4 + $0x3f0] sm:$0xff]
    %v477 = vld [vmem:[#allocation4 + $0x3f8] sm:$0xff]
    %v478 = vld [vmem:[#allocation4 + $0x400] sm:$0xff]
    %v479 = vld [vmem:[#allocation4 + $0x408] sm:$0xff]
    %v480 = vld [vmem:[#allocation4 + $0x410] sm:$0xff]
    %v481 = vld [vmem:[#allocation4 + $0x418] sm:$0xff]
    %v482 = vld [vmem:[#allocation4 + $0x420] sm:$0xff]
    %v483 = vld [vmem:[#allocation4 + $0x428] sm:$0xff]
    %v484 = vld [vmem:[#allocation4 + $0x430] sm:$0xff]
    %v485 = vld [vmem:[#allocation4 + $0x438] sm:$0xff]
    %v486 = vld [vmem:[#allocation4 + $0x440] sm:$0xff]
    %v487 = vld [vmem:[#allocation4 + $0x448] sm:$0xff]
    %v488 = vld [vmem:[#allocation4 + $0x450] sm:$0xff]
    %v489 = vld [vmem:[#allocation4 + $0x458] sm:$0xff]
    %v490 = vld [vmem:[#allocation4 + $0x460] sm:$0xff]
    %v491 = vld [vmem:[#allocation4 + $0x468] sm:$0xff]
    %v492 = vld [vmem:[#allocation4 + $0x470] sm:$0xff]
    %v493 = vld [vmem:[#allocation4 + $0x478] sm:$0xff]
    %v494 = vld [vmem:[#allocation4 + $0x480] sm:$0xff]
    %v495 = vld [vmem:[#allocation4 + $0x488] sm:$0xff]
    %v496 = vld [vmem:[#allocation4 + $0x490] sm:$0xff]
    %v497 = vld [vmem:[#allocation4 + $0x498] sm:$0xff]
    %v498 = vld [vmem:[#allocation4 + $0x4a0] sm:$0xff]
    %v499 = vld [vmem:[#allocation4 + $0x4a8] sm:$0xff]
    %v500 = vld [vmem:[#allocation4 + $0x4b0] sm:$0xff]
    %v501 = vld [vmem:[#allocation4 + $0x4b8] sm:$0xff]
    %v502 = vld [vmem:[#allocation4 + $0x4c0] sm:$0xff]
    %v503 = vld [vmem:[#allocation4 + $0x4c8] sm:$0xff]
    %v504 = vld [vmem:[#allocation4 + $0x4d0] sm:$0xff]
    %v505 = vld [vmem:[#allocation4 + $0x4d8] sm:$0xff]
    %v506 = vld [vmem:[#allocation4 + $0x4e0] sm:$0xff]
    %v507 = vld [vmem:[#allocation4 + $0x4e8] sm:$0xff]
    %v508 = vld [vmem:[#allocation4 + $0x4f0] sm:$0xff]
    %v509 = vld [vmem:[#allocation4 + $0x4f8] sm:$0xff]
    %v510 = vld [vmem:[#allocation4 + $0x500] sm:$0xff]
    %v511 = vld [vmem:[#allocation4 + $0x508] sm:$0xff]
    %v512 = vld [vmem:[#allocation4 + $0x510] sm:$0xff]
    %v513 = vld [vmem:[#allocation4 + $0x518] sm:$0xff]
    %v514 = vld [vmem:[#allocation4 + $0x520] sm:$0xff]
    %v515 = vld [vmem:[#allocation4 + $0x528] sm:$0xff]
    %v516 = vld [vmem:[#allocation4 + $0x530] sm:$0xff]
    %v517 = vld [vmem:[#allocation4 + $0x538] sm:$0xff]
    %v518 = vld [vmem:[#allocation4 + $0x540] sm:$0xff]
    %v519 = vld [vmem:[#allocation4 + $0x548] sm:$0xff]
    %v520 = vld [vmem:[#allocation4 + $0x550] sm:$0xff]
    %v521 = vld [vmem:[#allocation4 + $0x558] sm:$0xff]
    %v522 = vld [vmem:[#allocation4 + $0x560] sm:$0xff]
    %v523 = vld [vmem:[#allocation4 + $0x568] sm:$0xff]
    %v524 = vld [vmem:[#allocation4 + $0x570] sm:$0xff]
    %v525 = vld [vmem:[#allocation4 + $0x578] sm:$0xff]
    %v526 = vld [vmem:[#allocation4 + $0x580] sm:$0xff]
    %v527 = vld [vmem:[#allocation4 + $0x588] sm:$0xff]
    %v528 = vld [vmem:[#allocation4 + $0x590] sm:$0xff]
    %v529 = vld [vmem:[#allocation4 + $0x598] sm:$0xff]
    %v530 = vld [vmem:[#allocation4 + $0x5a0] sm:$0xff]
    %v531 = vld [vmem:[#allocation4 + $0x5a8] sm:$0xff]
    %v532 = vld [vmem:[#allocation4 + $0x5b0] sm:$0xff]
    %v533 = vld [vmem:[#allocation4 + $0x5b8] sm:$0xff]
    %v534 = vld [vmem:[#allocation4 + $0x5c0] sm:$0xff]
    %v535 = vld [vmem:[#allocation4 + $0x5c8] sm:$0xff]
    %v536 = vld [vmem:[#allocation4 + $0x5d0] sm:$0xff]
    %v537 = vld [vmem:[#allocation4 + $0x5d8] sm:$0xff]
    %v538 = vld [vmem:[#allocation4 + $0x5e0] sm:$0xff]
    %v539 = vld [vmem:[#allocation4 + $0x5e8] sm:$0xff]
    %v540 = vld [vmem:[#allocation4 + $0x5f0] sm:$0xff]
    %v541 = vld [vmem:[#allocation4 + $0x5f8] sm:$0xff]
    %v542 = vld [vmem:[%s4] sm:$0xf]
    %v544 = vlaneseq
    %v545 = vshrl.u32 %v544, 7
    %v546 = vsub.s32 0, %v545
    %v547 = vrot.slane %v542, %v546
    %v548 = vlaneseq
    %v549 = vshrl.u32 %v548, 7
    %v550 = vsub.s32 1, %v549
    %v551 = vrot.slane %v542, %v550
    %v552 = vlaneseq
    %v553 = vshrl.u32 %v552, 7
    %v554 = vsub.s32 2, %v553
    %v555 = vrot.slane %v542, %v554
    %v556 = vlaneseq
    %v557 = vshrl.u32 %v556, 7
    %v558 = vsub.s32 3, %v557
    %v559 = vrot.slane %v542, %v558
    %v756 = vunpack.c.l.b16 %v350
    %v757 = vunpack.c.h.b16 %v350
    %v758 = vunpack.c.l.b16 %v351
    %v759 = vunpack.c.h.b16 %v351
    %v760 = vunpack.c.l.b16 %v352
    %v761 = vunpack.c.h.b16 %v352
    %v762 = vunpack.c.l.b16 %v353
    %v763 = vunpack.c.h.b16 %v353
    %v764 = vunpack.c.l.b16 %v354
    %v765 = vunpack.c.h.b16 %v354
    %v766 = vunpack.c.l.b16 %v355
    %v767 = vunpack.c.h.b16 %v355
    %v768 = vunpack.c.l.b16 %v356
    %v769 = vunpack.c.h.b16 %v356
    %v770 = vunpack.c.l.b16 %v357
    %v771 = vunpack.c.h.b16 %v357
    %v772 = vunpack.c.l.b16 %v358
    %v773 = vunpack.c.h.b16 %v358
    %v774 = vunpack.c.l.b16 %v359
    %v775 = vunpack.c.h.b16 %v359
    %v776 = vunpack.c.l.b16 %v360
    %v777 = vunpack.c.h.b16 %v360
    %v778 = vunpack.c.l.b16 %v361
    %v779 = vunpack.c.h.b16 %v361
    %v780 = vunpack.c.l.b16 %v362
    %v781 = vunpack.c.h.b16 %v362
    %v782 = vunpack.c.l.b16 %v363
    %v783 = vunpack.c.h.b16 %v363
    %v784 = vunpack.c.l.b16 %v364
    %v785 = vunpack.c.h.b16 %v364
    %v786 = vunpack.c.l.b16 %v365
    %v787 = vunpack.c.h.b16 %v365
    %v788 = vunpack.c.l.b16 %v366
    %v789 = vunpack.c.h.b16 %v366
    %v790 = vunpack.c.l.b16 %v367
    %v791 = vunpack.c.h.b16 %v367
    %v792 = vunpack.c.l.b16 %v368
    %v793 = vunpack.c.h.b16 %v368
    %v794 = vunpack.c.l.b16 %v369
    %v795 = vunpack.c.h.b16 %v369
    %v796 = vunpack.c.l.b16 %v370
    %v797 = vunpack.c.h.b16 %v370
    %v798 = vunpack.c.l.b16 %v371
    %v799 = vunpack.c.h.b16 %v371
    %v800 = vunpack.c.l.b16 %v372
    %v801 = vunpack.c.h.b16 %v372
    %v802 = vunpack.c.l.b16 %v373
    %v803 = vunpack.c.h.b16 %v373
    %v804 = vunpack.c.l.b16 %v374
    %v805 = vunpack.c.h.b16 %v374
    %v806 = vunpack.c.l.b16 %v375
    %v807 = vunpack.c.h.b16 %v375
    %v808 = vunpack.c.l.b16 %v376
    %v809 = vunpack.c.h.b16 %v376
    %v810 = vunpack.c.l.b16 %v377
    %v811 = vunpack.c.h.b16 %v377
    %v812 = vunpack.c.l.b16 %v378
    %v813 = vunpack.c.h.b16 %v378
    %v814 = vunpack.c.l.b16 %v379
    %v815 = vunpack.c.h.b16 %v379
    %v816 = vunpack.c.l.b16 %v380
    %v817 = vunpack.c.h.b16 %v380
    %v818 = vunpack.c.l.b16 %v381
    %v819 = vunpack.c.h.b16 %v381
    %v820 = vunpack.c.l.b16 %v382
    %v821 = vunpack.c.h.b16 %v382
    %v822 = vunpack.c.l.b16 %v383
    %v823 = vunpack.c.h.b16 %v383
    %v824 = vunpack.c.l.b16 %v384
    %v825 = vunpack.c.h.b16 %v384
    %v826 = vunpack.c.l.b16 %v385
    %v827 = vunpack.c.h.b16 %v385
    %v828 = vunpack.c.l.b16 %v386
    %v829 = vunpack.c.h.b16 %v386
    %v830 = vunpack.c.l.b16 %v387
    %v831 = vunpack.c.h.b16 %v387
    %v832 = vunpack.c.l.b16 %v388
    %v833 = vunpack.c.h.b16 %v388
    %v834 = vunpack.c.l.b16 %v389
    %v835 = vunpack.c.h.b16 %v389
    %v836 = vunpack.c.l.b16 %v390
    %v837 = vunpack.c.h.b16 %v390
    %v838 = vunpack.c.l.b16 %v391
    %v839 = vunpack.c.h.b16 %v391
    %v840 = vunpack.c.l.b16 %v392
    %v841 = vunpack.c.h.b16 %v392
    %v842 = vunpack.c.l.b16 %v393
    %v843 = vunpack.c.h.b16 %v393
    %v844 = vunpack.c.l.b16 %v394
    %v845 = vunpack.c.h.b16 %v394
    %v846 = vunpack.c.l.b16 %v395
    %v847 = vunpack.c.h.b16 %v395
    %v848 = vunpack.c.l.b16 %v396
    %v849 = vunpack.c.h.b16 %v396
    %v850 = vunpack.c.l.b16 %v397
    %v851 = vunpack.c.h.b16 %v397
    %v852 = vunpack.c.l.b16 %v398
    %v853 = vunpack.c.h.b16 %v398
    %v854 = vunpack.c.l.b16 %v399
    %v855 = vunpack.c.h.b16 %v399
    %v856 = vunpack.c.l.b16 %v400
    %v857 = vunpack.c.h.b16 %v400
    %v858 = vunpack.c.l.b16 %v401
    %v859 = vunpack.c.h.b16 %v401
    %v860 = vunpack.c.l.b16 %v402
    %v861 = vunpack.c.h.b16 %v402
    %v862 = vunpack.c.l.b16 %v403
    %v863 = vunpack.c.h.b16 %v403
    %v864 = vunpack.c.l.b16 %v404
    %v865 = vunpack.c.h.b16 %v404
    %v866 = vunpack.c.l.b16 %v405
    %v867 = vunpack.c.h.b16 %v405
    %v868 = vunpack.c.l.b16 %v406
    %v869 = vunpack.c.h.b16 %v406
    %v870 = vunpack.c.l.b16 %v407
    %v871 = vunpack.c.h.b16 %v407
    %v872 = vunpack.c.l.b16 %v408
    %v873 = vunpack.c.h.b16 %v408
    %v874 = vunpack.c.l.b16 %v409
    %v875 = vunpack.c.h.b16 %v409
    %v876 = vunpack.c.l.b16 %v410
    %v877 = vunpack.c.h.b16 %v410
    %v878 = vunpack.c.l.b16 %v411
    %v879 = vunpack.c.h.b16 %v411
    %v880 = vunpack.c.l.b16 %v412
    %v881 = vunpack.c.h.b16 %v412
    %v882 = vunpack.c.l.b16 %v413
    %v883 = vunpack.c.h.b16 %v413
    %v884 = vunpack.c.l.b16 %v414
    %v885 = vunpack.c.h.b16 %v414
    %v886 = vunpack.c.l.b16 %v415
    %v887 = vunpack.c.h.b16 %v415
    %v888 = vunpack.c.l.b16 %v416
    %v889 = vunpack.c.h.b16 %v416
    %v890 = vunpack.c.l.b16 %v417
    %v891 = vunpack.c.h.b16 %v417
    %v892 = vunpack.c.l.b16 %v418
    %v893 = vunpack.c.h.b16 %v418
    %v894 = vunpack.c.l.b16 %v419
    %v895 = vunpack.c.h.b16 %v419
    %v896 = vunpack.c.l.b16 %v420
    %v897 = vunpack.c.h.b16 %v420
    %v898 = vunpack.c.l.b16 %v421
    %v899 = vunpack.c.h.b16 %v421
    %v900 = vunpack.c.l.b16 %v422
    %v901 = vunpack.c.h.b16 %v422
    %v902 = vunpack.c.l.b16 %v423
    %v903 = vunpack.c.h.b16 %v423
    %v904 = vunpack.c.l.b16 %v424
    %v905 = vunpack.c.h.b16 %v424
    %v906 = vunpack.c.l.b16 %v425
    %v907 = vunpack.c.h.b16 %v425
    %v908 = vunpack.c.l.b16 %v426
    %v909 = vunpack.c.h.b16 %v426
    %v910 = vunpack.c.l.b16 %v427
    %v911 = vunpack.c.h.b16 %v427
    %v912 = vunpack.c.l.b16 %v428
    %v913 = vunpack.c.h.b16 %v428
    %v914 = vunpack.c.l.b16 %v429
    %v915 = vunpack.c.h.b16 %v429
    %v916 = vunpack.c.l.b16 %v430
    %v917 = vunpack.c.h.b16 %v430
    %v918 = vunpack.c.l.b16 %v431
    %v919 = vunpack.c.h.b16 %v431
    %v920 = vunpack.c.l.b16 %v432
    %v921 = vunpack.c.h.b16 %v432
    %v922 = vunpack.c.l.b16 %v433
    %v923 = vunpack.c.h.b16 %v433
    %v924 = vunpack.c.l.b16 %v434
    %v925 = vunpack.c.h.b16 %v434
    %v926 = vunpack.c.l.b16 %v435
    %v927 = vunpack.c.h.b16 %v435
    %v928 = vunpack.c.l.b16 %v436
    %v929 = vunpack.c.h.b16 %v436
    %v930 = vunpack.c.l.b16 %v437
    %v931 = vunpack.c.h.b16 %v437
    %v932 = vunpack.c.l.b16 %v438
    %v933 = vunpack.c.h.b16 %v438
    %v934 = vunpack.c.l.b16 %v439
    %v935 = vunpack.c.h.b16 %v439
    %v936 = vunpack.c.l.b16 %v440
    %v937 = vunpack.c.h.b16 %v440
    %v938 = vunpack.c.l.b16 %v441
    %v939 = vunpack.c.h.b16 %v441
    %v940 = vunpack.c.l.b16 %v442
    %v941 = vunpack.c.h.b16 %v442
    %v942 = vunpack.c.l.b16 %v443
    %v943 = vunpack.c.h.b16 %v443
    %v944 = vunpack.c.l.b16 %v444
    %v945 = vunpack.c.h.b16 %v444
    %v946 = vunpack.c.l.b16 %v445
    %v947 = vunpack.c.h.b16 %v445
    %v948 = vunpack.c.l.b16 %v446
    %v949 = vunpack.c.h.b16 %v446
    %v950 = vunpack.c.l.b16 %v447
    %v951 = vunpack.c.h.b16 %v447
    %v952 = vunpack.c.l.b16 %v448
    %v953 = vunpack.c.h.b16 %v448
    %v954 = vunpack.c.l.b16 %v449
    %v955 = vunpack.c.h.b16 %v449
    %v956 = vunpack.c.l.b16 %v450
    %v957 = vunpack.c.h.b16 %v450
    %v958 = vunpack.c.l.b16 %v451
    %v959 = vunpack.c.h.b16 %v451
    %v960 = vunpack.c.l.b16 %v452
    %v961 = vunpack.c.h.b16 %v452
    %v962 = vunpack.c.l.b16 %v453
    %v963 = vunpack.c.h.b16 %v453
    %v964 = vunpack.c.l.b16 %v454
    %v965 = vunpack.c.h.b16 %v454
    %v966 = vunpack.c.l.b16 %v455
    %v967 = vunpack.c.h.b16 %v455
    %v968 = vunpack.c.l.b16 %v456
    %v969 = vunpack.c.h.b16 %v456
    %v970 = vunpack.c.l.b16 %v457
    %v971 = vunpack.c.h.b16 %v457
    %v972 = vunpack.c.l.b16 %v458
    %v973 = vunpack.c.h.b16 %v458
    %v974 = vunpack.c.l.b16 %v459
    %v975 = vunpack.c.h.b16 %v459
    %v976 = vunpack.c.l.b16 %v460
    %v977 = vunpack.c.h.b16 %v460
    %v978 = vunpack.c.l.b16 %v461
    %v979 = vunpack.c.h.b16 %v461
    %v980 = vunpack.c.l.b16 %v462
    %v981 = vunpack.c.h.b16 %v462
    %v982 = vunpack.c.l.b16 %v463
    %v983 = vunpack.c.h.b16 %v463
    %v984 = vunpack.c.l.b16 %v464
    %v985 = vunpack.c.h.b16 %v464
    %v986 = vunpack.c.l.b16 %v465
    %v987 = vunpack.c.h.b16 %v465
    %v988 = vunpack.c.l.b16 %v466
    %v989 = vunpack.c.h.b16 %v466
    %v990 = vunpack.c.l.b16 %v467
    %v991 = vunpack.c.h.b16 %v467
    %v992 = vunpack.c.l.b16 %v468
    %v993 = vunpack.c.h.b16 %v468
    %v994 = vunpack.c.l.b16 %v469
    %v995 = vunpack.c.h.b16 %v469
    %v996 = vunpack.c.l.b16 %v470
    %v997 = vunpack.c.h.b16 %v470
    %v998 = vunpack.c.l.b16 %v471
    %v999 = vunpack.c.h.b16 %v471
    %v1000 = vunpack.c.l.b16 %v472
    %v1001 = vunpack.c.h.b16 %v472
    %v1002 = vunpack.c.l.b16 %v473
    %v1003 = vunpack.c.h.b16 %v473
    %v1004 = vunpack.c.l.b16 %v474
    %v1005 = vunpack.c.h.b16 %v474
    %v1006 = vunpack.c.l.b16 %v475
    %v1007 = vunpack.c.h.b16 %v475
    %v1008 = vunpack.c.l.b16 %v476
    %v1009 = vunpack.c.h.b16 %v476
    %v1010 = vunpack.c.l.b16 %v477
    %v1011 = vunpack.c.h.b16 %v477
    %v1012 = vunpack.c.l.b16 %v478
    %v1013 = vunpack.c.h.b16 %v478
    %v1014 = vunpack.c.l.b16 %v479
    %v1015 = vunpack.c.h.b16 %v479
    %v1016 = vunpack.c.l.b16 %v480
    %v1017 = vunpack.c.h.b16 %v480
    %v1018 = vunpack.c.l.b16 %v481
    %v1019 = vunpack.c.h.b16 %v481
    %v1020 = vunpack.c.l.b16 %v482
    %v1021 = vunpack.c.h.b16 %v482
    %v1022 = vunpack.c.l.b16 %v483
    %v1023 = vunpack.c.h.b16 %v483
    %v1024 = vunpack.c.l.b16 %v484
    %v1025 = vunpack.c.h.b16 %v484
    %v1026 = vunpack.c.l.b16 %v485
    %v1027 = vunpack.c.h.b16 %v485
    %v1028 = vunpack.c.l.b16 %v486
    %v1029 = vunpack.c.h.b16 %v486
    %v1030 = vunpack.c.l.b16 %v487
    %v1031 = vunpack.c.h.b16 %v487
    %v1032 = vunpack.c.l.b16 %v488
    %v1033 = vunpack.c.h.b16 %v488
    %v1034 = vunpack.c.l.b16 %v489
    %v1035 = vunpack.c.h.b16 %v489
    %v1036 = vunpack.c.l.b16 %v490
    %v1037 = vunpack.c.h.b16 %v490
    %v1038 = vunpack.c.l.b16 %v491
    %v1039 = vunpack.c.h.b16 %v491
    %v1040 = vunpack.c.l.b16 %v492
    %v1041 = vunpack.c.h.b16 %v492
    %v1042 = vunpack.c.l.b16 %v493
    %v1043 = vunpack.c.h.b16 %v493
    %v1044 = vunpack.c.l.b16 %v494
    %v1045 = vunpack.c.h.b16 %v494
    %v1046 = vunpack.c.l.b16 %v495
    %v1047 = vunpack.c.h.b16 %v495
    %v1048 = vunpack.c.l.b16 %v496
    %v1049 = vunpack.c.h.b16 %v496
    %v1050 = vunpack.c.l.b16 %v497
    %v1051 = vunpack.c.h.b16 %v497
    %v1052 = vunpack.c.l.b16 %v498
    %v1053 = vunpack.c.h.b16 %v498
    %v1054 = vunpack.c.l.b16 %v499
    %v1055 = vunpack.c.h.b16 %v499
    %v1056 = vunpack.c.l.b16 %v500
    %v1057 = vunpack.c.h.b16 %v500
    %v1058 = vunpack.c.l.b16 %v501
    %v1059 = vunpack.c.h.b16 %v501
    %v1060 = vunpack.c.l.b16 %v502
    %v1061 = vunpack.c.h.b16 %v502
    %v1062 = vunpack.c.l.b16 %v503
    %v1063 = vunpack.c.h.b16 %v503
    %v1064 = vunpack.c.l.b16 %v504
    %v1065 = vunpack.c.h.b16 %v504
    %v1066 = vunpack.c.l.b16 %v505
    %v1067 = vunpack.c.h.b16 %v505
    %v1068 = vunpack.c.l.b16 %v506
    %v1069 = vunpack.c.h.b16 %v506
    %v1070 = vunpack.c.l.b16 %v507
    %v1071 = vunpack.c.h.b16 %v507
    %v1072 = vunpack.c.l.b16 %v508
    %v1073 = vunpack.c.h.b16 %v508
    %v1074 = vunpack.c.l.b16 %v509
    %v1075 = vunpack.c.h.b16 %v509
    %v1076 = vunpack.c.l.b16 %v510
    %v1077 = vunpack.c.h.b16 %v510
    %v1078 = vunpack.c.l.b16 %v511
    %v1079 = vunpack.c.h.b16 %v511
    %v1080 = vunpack.c.l.b16 %v512
    %v1081 = vunpack.c.h.b16 %v512
    %v1082 = vunpack.c.l.b16 %v513
    %v1083 = vunpack.c.h.b16 %v513
    %v1084 = vunpack.c.l.b16 %v514
    %v1085 = vunpack.c.h.b16 %v514
    %v1086 = vunpack.c.l.b16 %v515
    %v1087 = vunpack.c.h.b16 %v515
    %v1088 = vunpack.c.l.b16 %v516
    %v1089 = vunpack.c.h.b16 %v516
    %v1090 = vunpack.c.l.b16 %v517
    %v1091 = vunpack.c.h.b16 %v517
    %v1092 = vunpack.c.l.b16 %v518
    %v1093 = vunpack.c.h.b16 %v518
    %v1094 = vunpack.c.l.b16 %v519
    %v1095 = vunpack.c.h.b16 %v519
    %v1096 = vunpack.c.l.b16 %v520
    %v1097 = vunpack.c.h.b16 %v520
    %v1098 = vunpack.c.l.b16 %v521
    %v1099 = vunpack.c.h.b16 %v521
    %v1100 = vunpack.c.l.b16 %v522
    %v1101 = vunpack.c.h.b16 %v522
    %v1102 = vunpack.c.l.b16 %v523
    %v1103 = vunpack.c.h.b16 %v523
    %v1104 = vunpack.c.l.b16 %v524
    %v1105 = vunpack.c.h.b16 %v524
    %v1106 = vunpack.c.l.b16 %v525
    %v1107 = vunpack.c.h.b16 %v525
    %v1108 = vunpack.c.l.b16 %v526
    %v1109 = vunpack.c.h.b16 %v526
    %v1110 = vunpack.c.l.b16 %v527
    %v1111 = vunpack.c.h.b16 %v527
    %v1112 = vunpack.c.l.b16 %v528
    %v1113 = vunpack.c.h.b16 %v528
    %v1114 = vunpack.c.l.b16 %v529
    %v1115 = vunpack.c.h.b16 %v529
    %v1116 = vunpack.c.l.b16 %v530
    %v1117 = vunpack.c.h.b16 %v530
    %v1118 = vunpack.c.l.b16 %v531
    %v1119 = vunpack.c.h.b16 %v531
    %v1120 = vunpack.c.l.b16 %v532
    %v1121 = vunpack.c.h.b16 %v532
    %v1122 = vunpack.c.l.b16 %v533
    %v1123 = vunpack.c.h.b16 %v533
    %v1124 = vunpack.c.l.b16 %v534
    %v1125 = vunpack.c.h.b16 %v534
    %v1126 = vunpack.c.l.b16 %v535
    %v1127 = vunpack.c.h.b16 %v535
    %v1128 = vunpack.c.l.b16 %v536
    %v1129 = vunpack.c.h.b16 %v536
    %v1130 = vunpack.c.l.b16 %v537
    %v1131 = vunpack.c.h.b16 %v537
    %v1132 = vunpack.c.l.b16 %v538
    %v1133 = vunpack.c.h.b16 %v538
    %v1134 = vunpack.c.l.b16 %v539
    %v1135 = vunpack.c.h.b16 %v539
    %v1136 = vunpack.c.l.b16 %v540
    %v1137 = vunpack.c.h.b16 %v540
    %v1138 = vunpack.c.l.b16 %v541
    %v1139 = vunpack.c.h.b16 %v541
    %v1140 = vpack.c.b16 %v760, %v756
    %v1141 = vpack.c.b16 %v761, %v757
    %v1142 = vpack.c.b16 %v762, %v758
    %v1143 = vpack.c.b16 %v763, %v759
    %v1144 = vpack.c.b16 %v768, %v764
    %v1145 = vpack.c.b16 %v769, %v765
    %v1146 = vpack.c.b16 %v770, %v766
    %v1147 = vpack.c.b16 %v771, %v767
    %v1148 = vpack.c.b16 %v776, %v772
    %v1149 = vpack.c.b16 %v777, %v773
    %v1150 = vpack.c.b16 %v778, %v774
    %v1151 = vpack.c.b16 %v779, %v775
    %v1152 = vpack.c.b16 %v784, %v780
    %v1153 = vpack.c.b16 %v785, %v781
    %v1154 = vpack.c.b16 %v786, %v782
    %v1155 = vpack.c.b16 %v787, %v783
    %v1156 = vpack.c.b16 %v792, %v788
    %v1157 = vpack.c.b16 %v793, %v789
    %v1158 = vpack.c.b16 %v794, %v790
    %v1159 = vpack.c.b16 %v795, %v791
    %v1160 = vpack.c.b16 %v800, %v796
    %v1161 = vpack.c.b16 %v801, %v797
    %v1162 = vpack.c.b16 %v802, %v798
    %v1163 = vpack.c.b16 %v803, %v799
    %v1164 = vpack.c.b16 %v808, %v804
    %v1165 = vpack.c.b16 %v809, %v805
    %v1166 = vpack.c.b16 %v810, %v806
    %v1167 = vpack.c.b16 %v811, %v807
    %v1168 = vpack.c.b16 %v816, %v812
    %v1169 = vpack.c.b16 %v817, %v813
    %v1170 = vpack.c.b16 %v818, %v814
    %v1171 = vpack.c.b16 %v819, %v815
    %v1172 = vpack.c.b16 %v824, %v820
    %v1173 = vpack.c.b16 %v825, %v821
    %v1174 = vpack.c.b16 %v826, %v822
    %v1175 = vpack.c.b16 %v827, %v823
    %v1176 = vpack.c.b16 %v832, %v828
    %v1177 = vpack.c.b16 %v833, %v829
    %v1178 = vpack.c.b16 %v834, %v830
    %v1179 = vpack.c.b16 %v835, %v831
    %v1180 = vpack.c.b16 %v840, %v836
    %v1181 = vpack.c.b16 %v841, %v837
    %v1182 = vpack.c.b16 %v842, %v838
    %v1183 = vpack.c.b16 %v843, %v839
    %v1184 = vpack.c.b16 %v848, %v844
    %v1185 = vpack.c.b16 %v849, %v845
    %v1186 = vpack.c.b16 %v850, %v846
    %v1187 = vpack.c.b16 %v851, %v847
    %v1188 = vpack.c.b16 %v856, %v852
    %v1189 = vpack.c.b16 %v857, %v853
    %v1190 = vpack.c.b16 %v858, %v854
    %v1191 = vpack.c.b16 %v859, %v855
    %v1192 = vpack.c.b16 %v864, %v860
    %v1193 = vpack.c.b16 %v865, %v861
    %v1194 = vpack.c.b16 %v866, %v862
    %v1195 = vpack.c.b16 %v867, %v863
    %v1196 = vpack.c.b16 %v872, %v868
    %v1197 = vpack.c.b16 %v873, %v869
    %v1198 = vpack.c.b16 %v874, %v870
    %v1199 = vpack.c.b16 %v875, %v871
    %v1200 = vpack.c.b16 %v880, %v876
    %v1201 = vpack.c.b16 %v881, %v877
    %v1202 = vpack.c.b16 %v882, %v878
    %v1203 = vpack.c.b16 %v883, %v879
    %v1204 = vpack.c.b16 %v888, %v884
    %v1205 = vpack.c.b16 %v889, %v885
    %v1206 = vpack.c.b16 %v890, %v886
    %v1207 = vpack.c.b16 %v891, %v887
    %v1208 = vpack.c.b16 %v896, %v892
    %v1209 = vpack.c.b16 %v897, %v893
    %v1210 = vpack.c.b16 %v898, %v894
    %v1211 = vpack.c.b16 %v899, %v895
    %v1212 = vpack.c.b16 %v904, %v900
    %v1213 = vpack.c.b16 %v905, %v901
    %v1214 = vpack.c.b16 %v906, %v902
    %v1215 = vpack.c.b16 %v907, %v903
    %v1216 = vpack.c.b16 %v912, %v908
    %v1217 = vpack.c.b16 %v913, %v909
    %v1218 = vpack.c.b16 %v914, %v910
    %v1219 = vpack.c.b16 %v915, %v911
    %v1220 = vpack.c.b16 %v920, %v916
    %v1221 = vpack.c.b16 %v921, %v917
    %v1222 = vpack.c.b16 %v922, %v918
    %v1223 = vpack.c.b16 %v923, %v919
    %v1224 = vpack.c.b16 %v928, %v924
    %v1225 = vpack.c.b16 %v929, %v925
    %v1226 = vpack.c.b16 %v930, %v926
    %v1227 = vpack.c.b16 %v931, %v927
    %v1228 = vpack.c.b16 %v936, %v932
    %v1229 = vpack.c.b16 %v937, %v933
    %v1230 = vpack.c.b16 %v938, %v934
    %v1231 = vpack.c.b16 %v939, %v935
    %v1232 = vpack.c.b16 %v944, %v940
    %v1233 = vpack.c.b16 %v945, %v941
    %v1234 = vpack.c.b16 %v946, %v942
    %v1235 = vpack.c.b16 %v947, %v943
    %v1236 = vpack.c.b16 %v952, %v948
    %v1237 = vpack.c.b16 %v953, %v949
    %v1238 = vpack.c.b16 %v954, %v950
    %v1239 = vpack.c.b16 %v955, %v951
    %v1240 = vpack.c.b16 %v960, %v956
    %v1241 = vpack.c.b16 %v961, %v957
    %v1242 = vpack.c.b16 %v962, %v958
    %v1243 = vpack.c.b16 %v963, %v959
    %v1244 = vpack.c.b16 %v968, %v964
    %v1245 = vpack.c.b16 %v969, %v965
    %v1246 = vpack.c.b16 %v970, %v966
    %v1247 = vpack.c.b16 %v971, %v967
    %v1248 = vpack.c.b16 %v976, %v972
    %v1249 = vpack.c.b16 %v977, %v973
    %v1250 = vpack.c.b16 %v978, %v974
    %v1251 = vpack.c.b16 %v979, %v975
    %v1252 = vpack.c.b16 %v984, %v980
    %v1253 = vpack.c.b16 %v985, %v981
    %v1254 = vpack.c.b16 %v986, %v982
    %v1255 = vpack.c.b16 %v987, %v983
    %v1256 = vpack.c.b16 %v992, %v988
    %v1257 = vpack.c.b16 %v993, %v989
    %v1258 = vpack.c.b16 %v994, %v990
    %v1259 = vpack.c.b16 %v995, %v991
    %v1260 = vpack.c.b16 %v1000, %v996
    %v1261 = vpack.c.b16 %v1001, %v997
    %v1262 = vpack.c.b16 %v1002, %v998
    %v1263 = vpack.c.b16 %v1003, %v999
    %v1264 = vpack.c.b16 %v1008, %v1004
    %v1265 = vpack.c.b16 %v1009, %v1005
    %v1266 = vpack.c.b16 %v1010, %v1006
    %v1267 = vpack.c.b16 %v1011, %v1007
    %v1268 = vpack.c.b16 %v1016, %v1012
    %v1269 = vpack.c.b16 %v1017, %v1013
    %v1270 = vpack.c.b16 %v1018, %v1014
    %v1271 = vpack.c.b16 %v1019, %v1015
    %v1272 = vpack.c.b16 %v1024, %v1020
    %v1273 = vpack.c.b16 %v1025, %v1021
    %v1274 = vpack.c.b16 %v1026, %v1022
    %v1275 = vpack.c.b16 %v1027, %v1023
    %v1276 = vpack.c.b16 %v1032, %v1028
    %v1277 = vpack.c.b16 %v1033, %v1029
    %v1278 = vpack.c.b16 %v1034, %v1030
    %v1279 = vpack.c.b16 %v1035, %v1031
    %v1280 = vpack.c.b16 %v1040, %v1036
    %v1281 = vpack.c.b16 %v1041, %v1037
    %v1282 = vpack.c.b16 %v1042, %v1038
    %v1283 = vpack.c.b16 %v1043, %v1039
    %v1284 = vpack.c.b16 %v1048, %v1044
    %v1285 = vpack.c.b16 %v1049, %v1045
    %v1286 = vpack.c.b16 %v1050, %v1046
    %v1287 = vpack.c.b16 %v1051, %v1047
    %v1288 = vpack.c.b16 %v1056, %v1052
    %v1289 = vpack.c.b16 %v1057, %v1053
    %v1290 = vpack.c.b16 %v1058, %v1054
    %v1291 = vpack.c.b16 %v1059, %v1055
    %v1292 = vpack.c.b16 %v1064, %v1060
    %v1293 = vpack.c.b16 %v1065, %v1061
    %v1294 = vpack.c.b16 %v1066, %v1062
    %v1295 = vpack.c.b16 %v1067, %v1063
    %v1296 = vpack.c.b16 %v1072, %v1068
    %v1297 = vpack.c.b16 %v1073, %v1069
    %v1298 = vpack.c.b16 %v1074, %v1070
    %v1299 = vpack.c.b16 %v1075, %v1071
    %v1300 = vpack.c.b16 %v1080, %v1076
    %v1301 = vpack.c.b16 %v1081, %v1077
    %v1302 = vpack.c.b16 %v1082, %v1078
    %v1303 = vpack.c.b16 %v1083, %v1079
    %v1304 = vpack.c.b16 %v1088, %v1084
    %v1305 = vpack.c.b16 %v1089, %v1085
    %v1306 = vpack.c.b16 %v1090, %v1086
    %v1307 = vpack.c.b16 %v1091, %v1087
    %v1308 = vpack.c.b16 %v1096, %v1092
    %v1309 = vpack.c.b16 %v1097, %v1093
    %v1310 = vpack.c.b16 %v1098, %v1094
    %v1311 = vpack.c.b16 %v1099, %v1095
    %v1312 = vpack.c.b16 %v1104, %v1100
    %v1313 = vpack.c.b16 %v1105, %v1101
    %v1314 = vpack.c.b16 %v1106, %v1102
    %v1315 = vpack.c.b16 %v1107, %v1103
    %v1316 = vpack.c.b16 %v1112, %v1108
    %v1317 = vpack.c.b16 %v1113, %v1109
    %v1318 = vpack.c.b16 %v1114, %v1110
    %v1319 = vpack.c.b16 %v1115, %v1111
    %v1320 = vpack.c.b16 %v1120, %v1116
    %v1321 = vpack.c.b16 %v1121, %v1117
    %v1322 = vpack.c.b16 %v1122, %v1118
    %v1323 = vpack.c.b16 %v1123, %v1119
    %v1324 = vpack.c.b16 %v1128, %v1124
    %v1325 = vpack.c.b16 %v1129, %v1125
    %v1326 = vpack.c.b16 %v1130, %v1126
    %v1327 = vpack.c.b16 %v1131, %v1127
    %v1328 = vpack.c.b16 %v1136, %v1132
    %v1329 = vpack.c.b16 %v1137, %v1133
    %v1330 = vpack.c.b16 %v1138, %v1134
    %v1331 = vpack.c.b16 %v1139, %v1135
    %1524 = vmatprep.subr.bf16.mxu0 %v1141
    %1525 = vmatpush1.bf16.msra.mxu0 %v1140
    %1526 = vmatprep.subr.bf16.mxu0 %v1145
    %1527 = vmatpush1.bf16.msra.mxu0 %v1144
    %1528 = vmatprep.subr.bf16.mxu0 %v1149
    %1529 = vmatpush1.bf16.msra.mxu0 %v1148
    %1530 = vmatprep.subr.bf16.mxu0 %v1153
    %1531 = vmatpush1.bf16.msra.mxu0 %v1152
    %1532 = vmatprep.subr.bf16.mxu0 %v1157
    %1533 = vmatpush1.bf16.msra.mxu0 %v1156
    %1534 = vmatprep.subr.bf16.mxu0 %v1161
    %1535 = vmatpush1.bf16.msra.mxu0 %v1160
    %1536 = vmatprep.subr.bf16.mxu0 %v1165
    %1537 = vmatpush1.bf16.msra.mxu0 %v1164
    %1538 = vmatprep.subr.bf16.mxu0 %v1169
    %1539 = vmatpush1.bf16.msra.mxu0 %v1168
    %1540 = vmatprep.subr.bf16.mxu0 %v1173
    %1541 = vmatpush1.bf16.msra.mxu0 %v1172
    %1542 = vmatprep.subr.bf16.mxu0 %v1177
    %1543 = vmatpush1.bf16.msra.mxu0 %v1176
    %1544 = vmatprep.subr.bf16.mxu0 %v1181
    %1545 = vmatpush1.bf16.msra.mxu0 %v1180
    %1546 = vmatprep.subr.bf16.mxu0 %v1185
    %1547 = vmatpush1.bf16.msra.mxu0 %v1184
    %1548 = vmatprep.subr.bf16.mxu0 %v1189
    %1549 = vmatpush1.bf16.msra.mxu0 %v1188
    %1550 = vmatprep.subr.bf16.mxu0 %v1193
    %1551 = vmatpush1.bf16.msra.mxu0 %v1192
    %1552 = vmatprep.subr.bf16.mxu0 %v1197
    %1553 = vmatpush1.bf16.msra.mxu0 %v1196
    %1554 = vmatprep.subr.bf16.mxu0 %v1201
    %1555 = vmatpush1.bf16.msra.mxu0 %v1200
    %1556 = vmatprep.mubr.bf16.mxu0 %v345
    %1557 = vmatmul.mubr.bf16.gmra.mrb[0].mxu0 %v344
    %v1558 = vpop.f32.mrb[0].mxu0
    %v1559 = vadd.f32 %v547, %v1558
    %v1560 = vpop.f32.mrb[0].mxu0
    %v1561 = vadd.f32 %v551, %v1560
    %v1562 = vpop.f32.mrb[0].mxu0
    %v1563 = vadd.f32 %v547, %v1562
    %v1564 = vpop.f32.mrb[0].mxu0
    %v1565 = vadd.f32 %v551, %v1564
    %1566 = vdwg.mxu0
    %1567 = vmatprep.subr.bf16.mxu0 %v1205
    %1568 = vmatpush1.bf16.msra.mxu0 %v1204
    %1569 = vmatprep.subr.bf16.mxu0 %v1209
    %1570 = vmatpush1.bf16.msra.mxu0 %v1208
    %1571 = vmatprep.subr.bf16.mxu0 %v1213
    %1572 = vmatpush1.bf16.msra.mxu0 %v1212
    %1573 = vmatprep.subr.bf16.mxu0 %v1217
    %1574 = vmatpush1.bf16.msra.mxu0 %v1216
    %1575 = vmatprep.subr.bf16.mxu0 %v1221
    %1576 = vmatpush1.bf16.msra.mxu0 %v1220
    %1577 = vmatprep.subr.bf16.mxu0 %v1225
    %1578 = vmatpush1.bf16.msra.mxu0 %v1224
    %1579 = vmatprep.subr.bf16.mxu0 %v1229
    %1580 = vmatpush1.bf16.msra.mxu0 %v1228
    %1581 = vmatprep.subr.bf16.mxu0 %v1233
    %1582 = vmatpush1.bf16.msra.mxu0 %v1232
    %1583 = vmatprep.subr.bf16.mxu0 %v1237
    %1584 = vmatpush1.bf16.msra.mxu0 %v1236
    %1585 = vmatprep.subr.bf16.mxu0 %v1241
    %1586 = vmatpush1.bf16.msra.mxu0 %v1240
    %1587 = vmatprep.subr.bf16.mxu0 %v1245
    %1588 = vmatpush1.bf16.msra.mxu0 %v1244
    %1589 = vmatprep.subr.bf16.mxu0 %v1249
    %1590 = vmatpush1.bf16.msra.mxu0 %v1248
    %1591 = vmatprep.subr.bf16.mxu0 %v1253
    %1592 = vmatpush1.bf16.msra.mxu0 %v1252
    %1593 = vmatprep.subr.bf16.mxu0 %v1257
    %1594 = vmatpush1.bf16.msra.mxu0 %v1256
    %1595 = vmatprep.subr.bf16.mxu0 %v1261
    %1596 = vmatpush1.bf16.msra.mxu0 %v1260
    %1597 = vmatprep.subr.bf16.mxu0 %v1265
    %1598 = vmatpush1.bf16.msra.mxu0 %v1264
    %1599 = vmatprep.mubr.bf16.mxu0 %v347
    %1600 = vmatmul.mubr.bf16.gmra.mrb[0].mxu0 %v346
    %v1601 = vpop.f32.mrb[0].mxu0
    %v1602 = vadd.f32 %v1559, %v1601
    %v1603 = vpop.f32.mrb[0].mxu0
    %v1604 = vadd.f32 %v1561, %v1603
    %v1605 = vpop.f32.mrb[0].mxu0
    %v1606 = vadd.f32 %v1563, %v1605
    %v1607 = vpop.f32.mrb[0].mxu0
    %v1608 = vadd.f32 %v1565, %v1607
    %1609 = vdwg.mxu0
    %1610 = vmatprep.subr.bf16.mxu0 %v1269
    %1611 = vmatpush1.bf16.msra.mxu0 %v1268
    %1612 = vmatprep.subr.bf16.mxu0 %v1273
    %1613 = vmatpush1.bf16.msra.mxu0 %v1272
    %1614 = vmatprep.subr.bf16.mxu0 %v1277
    %1615 = vmatpush1.bf16.msra.mxu0 %v1276
    %1616 = vmatprep.subr.bf16.mxu0 %v1281
    %1617 = vmatpush1.bf16.msra.mxu0 %v1280
    %1618 = vmatprep.subr.bf16.mxu0 %v1285
    %1619 = vmatpush1.bf16.msra.mxu0 %v1284
    %1620 = vmatprep.subr.bf16.mxu0 %v1289
    %1621 = vmatpush1.bf16.msra.mxu0 %v1288
    %1622 = vmatprep.subr.bf16.mxu0 %v1293
    %1623 = vmatpush1.bf16.msra.mxu0 %v1292
    %1624 = vmatprep.subr.bf16.mxu0 %v1297
    %1625 = vmatpush1.bf16.msra.mxu0 %v1296
    %1626 = vmatprep.subr.bf16.mxu0 %v1301
    %1627 = vmatpush1.bf16.msra.mxu0 %v1300
    %1628 = vmatprep.subr.bf16.mxu0 %v1305
    %1629 = vmatpush1.bf16.msra.mxu0 %v1304
    %1630 = vmatprep.subr.bf16.mxu0 %v1309
    %1631 = vmatpush1.bf16.msra.mxu0 %v1308
    %1632 = vmatprep.subr.bf16.mxu0 %v1313
    %1633 = vmatpush1.bf16.msra.mxu0 %v1312
    %1634 = vmatprep.subr.bf16.mxu0 %v1317
    %1635 = vmatpush1.bf16.msra.mxu0 %v1316
    %1636 = vmatprep.subr.bf16.mxu0 %v1321
    %1637 = vmatpush1.bf16.msra.mxu0 %v1320
    %1638 = vmatprep.subr.bf16.mxu0 %v1325
    %1639 = vmatpush1.bf16.msra.mxu0 %v1324
    %1640 = vmatprep.subr.bf16.mxu0 %v1329
    %1641 = vmatpush1.bf16.msra.mxu0 %v1328
    %1642 = vmatprep.mubr.bf16.mxu0 %v349
    %1643 = vmatmul.mubr.bf16.gmra.mrb[0].mxu0 %v348
    %v1644 = vpop.f32.mrb[0].mxu0
    %v1645 = vadd.f32 %v1602, %v1644
    %v1646 = vpop.f32.mrb[0].mxu0
    %v1647 = vadd.f32 %v1604, %v1646
    %v1648 = vpop.f32.mrb[0].mxu0
    %v1649 = vadd.f32 %v1606, %v1648
    %v1650 = vpop.f32.mrb[0].mxu0
    %v1651 = vadd.f32 %v1608, %v1650
    %1652 = vdwg.mxu0
    %1653 = vmatprep.subr.bf16.mxu0 %v1143
    %1654 = vmatpush1.bf16.msra.mxu0 %v1142
    %1655 = vmatprep.subr.bf16.mxu0 %v1147
    %1656 = vmatpush1.bf16.msra.mxu0 %v1146
    %1657 = vmatprep.subr.bf16.mxu0 %v1151
    %1658 = vmatpush1.bf16.msra.mxu0 %v1150
    %1659 = vmatprep.subr.bf16.mxu0 %v1155
    %1660 = vmatpush1.bf16.msra.mxu0 %v1154
    %1661 = vmatprep.subr.bf16.mxu0 %v1159
    %1662 = vmatpush1.bf16.msra.mxu0 %v1158
    %1663 = vmatprep.subr.bf16.mxu0 %v1163
    %1664 = vmatpush1.bf16.msra.mxu0 %v1162
    %1665 = vmatprep.subr.bf16.mxu0 %v1167
    %1666 = vmatpush1.bf16.msra.mxu0 %v1166
    %1667 = vmatprep.subr.bf16.mxu0 %v1171
    %1668 = vmatpush1.bf16.msra.mxu0 %v1170
    %1669 = vmatprep.subr.bf16.mxu0 %v1175
    %1670 = vmatpush1.bf16.msra.mxu0 %v1174
    %1671 = vmatprep.subr.bf16.mxu0 %v1179
    %1672 = vmatpush1.bf16.msra.mxu0 %v1178
    %1673 = vmatprep.subr.bf16.mxu0 %v1183
    %1674 = vmatpush1.bf16.msra.mxu0 %v1182
    %1675 = vmatprep.subr.bf16.mxu0 %v1187
    %1676 = vmatpush1.bf16.msra.mxu0 %v1186
    %1677 = vmatprep.subr.bf16.mxu0 %v1191
    %1678 = vmatpush1.bf16.msra.mxu0 %v1190
    %1679 = vmatprep.subr.bf16.mxu0 %v1195
    %1680 = vmatpush1.bf16.msra.mxu0 %v1194
    %1681 = vmatprep.subr.bf16.mxu0 %v1199
    %1682 = vmatpush1.bf16.msra.mxu0 %v1198
    %1683 = vmatprep.subr.bf16.mxu0 %v1203
    %1684 = vmatpush1.bf16.msra.mxu0 %v1202
    %1685 = vmatprep.mubr.bf16.mxu0 %v345
    %1686 = vmatmul.mubr.bf16.gmra.mrb[0].mxu0 %v344
    %v1687 = vpop.f32.mrb[0].mxu0
    %v1688 = vadd.f32 %v555, %v1687
    %v1689 = vpop.f32.mrb[0].mxu0
    %v1690 = vadd.f32 %v559, %v1689
    %v1691 = vpop.f32.mrb[0].mxu0
    %v1692 = vadd.f32 %v555, %v1691
    %v1693 = vpop.f32.mrb[0].mxu0
    %v1694 = vadd.f32 %v559, %v1693
    %1695 = vdwg.mxu0
    %1696 = vmatprep.subr.bf16.mxu0 %v1207
    %1697 = vmatpush1.bf16.msra.mxu0 %v1206
    %1698 = vmatprep.subr.bf16.mxu0 %v1211
    %1699 = vmatpush1.bf16.msra.mxu0 %v1210
    %1700 = vmatprep.subr.bf16.mxu0 %v1215
    %1701 = vmatpush1.bf16.msra.mxu0 %v1214
    %1702 = vmatprep.subr.bf16.mxu0 %v1219
    %1703 = vmatpush1.bf16.msra.mxu0 %v1218
    %1704 = vmatprep.subr.bf16.mxu0 %v1223
    %1705 = vmatpush1.bf16.msra.mxu0 %v1222
    %1706 = vmatprep.subr.bf16.mxu0 %v1227
    %1707 = vmatpush1.bf16.msra.mxu0 %v1226
    %1708 = vmatprep.subr.bf16.mxu0 %v1231
    %1709 = vmatpush1.bf16.msra.mxu0 %v1230
    %1710 = vmatprep.subr.bf16.mxu0 %v1235
    %1711 = vmatpush1.bf16.msra.mxu0 %v1234
    %1712 = vmatprep.subr.bf16.mxu0 %v1239
    %1713 = vmatpush1.bf16.msra.mxu0 %v1238
    %1714 = vmatprep.subr.bf16.mxu0 %v1243
    %1715 = vmatpush1.bf16.msra.mxu0 %v1242
    %1716 = vmatprep.subr.bf16.mxu0 %v1247
    %1717 = vmatpush1.bf16.msra.mxu0 %v1246
    %1718 = vmatprep.subr.bf16.mxu0 %v1251
    %1719 = vmatpush1.bf16.msra.mxu0 %v1250
    %1720 = vmatprep.subr.bf16.mxu0 %v1255
    %1721 = vmatpush1.bf16.msra.mxu0 %v1254
    %1722 = vmatprep.subr.bf16.mxu0 %v1259
    %1723 = vmatpush1.bf16.msra.mxu0 %v1258
    %1724 = vmatprep.subr.bf16.mxu0 %v1263
    %1725 = vmatpush1.bf16.msra.mxu0 %v1262
    %1726 = vmatprep.subr.bf16.mxu0 %v1267
    %1727 = vmatpush1.bf16.msra.mxu0 %v1266
    %1728 = vmatprep.mubr.bf16.mxu0 %v347
    %1729 = vmatmul.mubr.bf16.gmra.mrb[0].mxu0 %v346
    %v1730 = vpop.f32.mrb[0].mxu0
    %v1731 = vadd.f32 %v1688, %v1730
    %v1732 = vpop.f32.mrb[0].mxu0
    %v1733 = vadd.f32 %v1690, %v1732
    %v1734 = vpop.f32.mrb[0].mxu0
    %v1735 = vadd.f32 %v1692, %v1734
    %v1736 = vpop.f32.mrb[0].mxu0
    %v1737 = vadd.f32 %v1694, %v1736
    %1738 = vdwg.mxu0
    %1739 = vmatprep.subr.bf16.mxu0 %v1271
    %1740 = vmatpush1.bf16.msra.mxu0 %v1270
    %1741 = vmatprep.subr.bf16.mxu0 %v1275
    %1742 = vmatpush1.bf16.msra.mxu0 %v1274
    %1743 = vmatprep.subr.bf16.mxu0 %v1279
    %1744 = vmatpush1.bf16.msra.mxu0 %v1278
    %1745 = vmatprep.subr.bf16.mxu0 %v1283
    %1746 = vmatpush1.bf16.msra.mxu0 %v1282
    %1747 = vmatprep.subr.bf16.mxu0 %v1287
    %1748 = vmatpush1.bf16.msra.mxu0 %v1286
    %1749 = vmatprep.subr.bf16.mxu0 %v1291
    %1750 = vmatpush1.bf16.msra.mxu0 %v1290
    %1751 = vmatprep.subr.bf16.mxu0 %v1295
    %1752 = vmatpush1.bf16.msra.mxu0 %v1294
    %1753 = vmatprep.subr.bf16.mxu0 %v1299
    %1754 = vmatpush1.bf16.msra.mxu0 %v1298
    %1755 = vmatprep.subr.bf16.mxu0 %v1303
    %1756 = vmatpush1.bf16.msra.mxu0 %v1302
    %1757 = vmatprep.subr.bf16.mxu0 %v1307
    %1758 = vmatpush1.bf16.msra.mxu0 %v1306
    %1759 = vmatprep.subr.bf16.mxu0 %v1311
    %1760 = vmatpush1.bf16.msra.mxu0 %v1310
    %1761 = vmatprep.subr.bf16.mxu0 %v1315
    %1762 = vmatpush1.bf16.msra.mxu0 %v1314
    %1763 = vmatprep.subr.bf16.mxu0 %v1319
    %1764 = vmatpush1.bf16.msra.mxu0 %v1318
    %1765 = vmatprep.subr.bf16.mxu0 %v1323
    %1766 = vmatpush1.bf16.msra.mxu0 %v1322
    %1767 = vmatprep.subr.bf16.mxu0 %v1327
    %1768 = vmatpush1.bf16.msra.mxu0 %v1326
    %1769 = vmatprep.subr.bf16.mxu0 %v1331
    %1770 = vmatpush1.bf16.msra.mxu0 %v1330
    %1771 = vmatprep.mubr.bf16.mxu0 %v349
    %1772 = vmatmul.mubr.bf16.gmra.mrb[0].mxu0 %v348
    %v1773 = vpop.f32.mrb[0].mxu0
    %v1774 = vadd.f32 %v1731, %v1773
    %v1775 = vpop.f32.mrb[0].mxu0
    %v1776 = vadd.f32 %v1733, %v1775
    %v1777 = vpop.f32.mrb[0].mxu0
    %v1778 = vadd.f32 %v1735, %v1777
    %v1779 = vpop.f32.mrb[0].mxu0
    %v1780 = vadd.f32 %v1737, %v1779
    %1781 = vdwg.mxu0
    %v1782 = vmax.f32 %v1645, 0.0
    %v1783 = vmax.f32 %v1647, 0.0
    %v1784 = vmax.f32 %v1774, 0.0
    %v1785 = vmax.f32 %v1776, 0.0
    %v1786 = vmax.f32 %v1649, 0.0
    %v1787 = vmax.f32 %v1651, 0.0
    %v1788 = vmax.f32 %v1778, 0.0
    %v1789 = vmax.f32 %v1780, 0.0
    %v1790 = vpack.c.bf16 %v1786, %v1782
    %v1791 = vpack.c.bf16 %v1787, %v1783
    %v1792 = vpack.c.bf16 %v1788, %v1784
    %v1793 = vpack.c.bf16 %v1789, %v1785
    %v1794 = vld [vmem:[#allocation6] sm:$0xff]
    %v1795 = vld [vmem:[#allocation6 + $0x8] sm:$0xff]
    %v1796 = vld [vmem:[#allocation6 + $0x10] sm:$0xff]
    %v1797 = vld [vmem:[#allocation6 + $0x18] sm:$0xff]
    %v1798 = vld [vmem:[#allocation6 + $0x20] sm:$0xff]
    %v1799 = vld [vmem:[#allocation6 + $0x28] sm:$0xff]
    %v1800 = vld [vmem:[#allocation6 + $0x30] sm:$0xff]
    %v1801 = vld [vmem:[#allocation6 + $0x38] sm:$0xff]
    %v1802 = vld [vmem:[#allocation6 + $0x40] sm:$0xff]
    %v1803 = vld [vmem:[#allocation6 + $0x48] sm:$0xff]
    %v1804 = vld [vmem:[#allocation6 + $0x50] sm:$0xff]
    %v1805 = vld [vmem:[#allocation6 + $0x58] sm:$0xff]
    %v1806 = vld [vmem:[#allocation6 + $0x60] sm:$0xff]
    %v1807 = vld [vmem:[#allocation6 + $0x68] sm:$0xff]
    %v1808 = vld [vmem:[#allocation6 + $0x70] sm:$0xff]
    %v1809 = vld [vmem:[#allocation6 + $0x78] sm:$0xff]
    %v1810 = vld [vmem:[#allocation6 + $0x80] sm:$0xff]
    %v1811 = vld [vmem:[#allocation6 + $0x88] sm:$0xff]
    %v1812 = vld [vmem:[#allocation6 + $0x90] sm:$0xff]
    %v1813 = vld [vmem:[#allocation6 + $0x98] sm:$0xff]
    %v1814 = vld [vmem:[#allocation6 + $0xa0] sm:$0xff]
    %v1815 = vld [vmem:[#allocation6 + $0xa8] sm:$0xff]
    %v1816 = vld [vmem:[#allocation6 + $0xb0] sm:$0xff]
    %v1817 = vld [vmem:[#allocation6 + $0xb8] sm:$0xff]
    %v1818 = vld [vmem:[#allocation6 + $0xc0] sm:$0xff]
    %v1819 = vld [vmem:[#allocation6 + $0xc8] sm:$0xff]
    %v1820 = vld [vmem:[#allocation6 + $0xd0] sm:$0xff]
    %v1821 = vld [vmem:[#allocation6 + $0xd8] sm:$0xff]
    %v1822 = vld [vmem:[#allocation6 + $0xe0] sm:$0xff]
    %v1823 = vld [vmem:[#allocation6 + $0xe8] sm:$0xff]
    %v1824 = vld [vmem:[#allocation6 + $0xf0] sm:$0xff]
    %v1825 = vld [vmem:[#allocation6 + $0xf8] sm:$0xff]
    %v1826 = vld [vmem:[#allocation6 + $0x100] sm:$0xff]
    %v1827 = vld [vmem:[#allocation6 + $0x108] sm:$0xff]
    %v1828 = vld [vmem:[#allocation6 + $0x110] sm:$0xff]
    %v1829 = vld [vmem:[#allocation6 + $0x118] sm:$0xff]
    %v1830 = vld [vmem:[#allocation6 + $0x120] sm:$0xff]
    %v1831 = vld [vmem:[#allocation6 + $0x128] sm:$0xff]
    %v1832 = vld [vmem:[#allocation6 + $0x130] sm:$0xff]
    %v1833 = vld [vmem:[#allocation6 + $0x138] sm:$0xff]
    %v1834 = vld [vmem:[#allocation6 + $0x140] sm:$0xff]
    %v1835 = vld [vmem:[#allocation6 + $0x148] sm:$0xff]
    %v1836 = vld [vmem:[#allocation6 + $0x150] sm:$0xff]
    %v1837 = vld [vmem:[#allocation6 + $0x158] sm:$0xff]
    %v1838 = vld [vmem:[#allocation6 + $0x160] sm:$0xff]
    %v1839 = vld [vmem:[#allocation6 + $0x168] sm:$0xff]
    %v1840 = vld [vmem:[#allocation6 + $0x170] sm:$0xff]
    %v1841 = vld [vmem:[#allocation6 + $0x178] sm:$0xff]
    %v1842 = vld [vmem:[#allocation6 + $0x180] sm:$0xff]
    %v1843 = vld [vmem:[#allocation6 + $0x188] sm:$0xff]
    %v1844 = vld [vmem:[#allocation6 + $0x190] sm:$0xff]
    %v1845 = vld [vmem:[#allocation6 + $0x198] sm:$0xff]
    %v1846 = vld [vmem:[#allocation6 + $0x1a0] sm:$0xff]
    %v1847 = vld [vmem:[#allocation6 + $0x1a8] sm:$0xff]
    %v1848 = vld [vmem:[#allocation6 + $0x1b0] sm:$0xff]
    %v1849 = vld [vmem:[#allocation6 + $0x1b8] sm:$0xff]
    %v1850 = vld [vmem:[#allocation6 + $0x1c0] sm:$0xff]
    %v1851 = vld [vmem:[#allocation6 + $0x1c8] sm:$0xff]
    %v1852 = vld [vmem:[#allocation6 + $0x1d0] sm:$0xff]
    %v1853 = vld [vmem:[#allocation6 + $0x1d8] sm:$0xff]
    %v1854 = vld [vmem:[#allocation6 + $0x1e0] sm:$0xff]
    %v1855 = vld [vmem:[#allocation6 + $0x1e8] sm:$0xff]
    %v1856 = vld [vmem:[#allocation6 + $0x1f0] sm:$0xff]
    %v1857 = vld [vmem:[#allocation6 + $0x1f8] sm:$0xff]
    %v1858 = vld [vmem:[%s6] sm:$0x3]
    %v1860 = vlaneseq
    %v1861 = vshrl.u32 %v1860, 7
    %v1862 = vsub.s32 0, %v1861
    %v1863 = vrot.slane %v1858, %v1862
    %v1864 = vlaneseq
    %v1865 = vshrl.u32 %v1864, 7
    %v1866 = vsub.s32 1, %v1865
    %v1867 = vrot.slane %v1858, %v1866
    %v1934 = vunpack.c.l.b16 %v1794
    %v1935 = vunpack.c.h.b16 %v1794
    %v1936 = vunpack.c.l.b16 %v1795
    %v1937 = vunpack.c.h.b16 %v1795
    %v1938 = vunpack.c.l.b16 %v1796
    %v1939 = vunpack.c.h.b16 %v1796
    %v1940 = vunpack.c.l.b16 %v1797
    %v1941 = vunpack.c.h.b16 %v1797
    %v1942 = vunpack.c.l.b16 %v1798
    %v1943 = vunpack.c.h.b16 %v1798
    %v1944 = vunpack.c.l.b16 %v1799
    %v1945 = vunpack.c.h.b16 %v1799
    %v1946 = vunpack.c.l.b16 %v1800
    %v1947 = vunpack.c.h.b16 %v1800
    %v1948 = vunpack.c.l.b16 %v1801
    %v1949 = vunpack.c.h.b16 %v1801
    %v1950 = vunpack.c.l.b16 %v1802
    %v1951 = vunpack.c.h.b16 %v1802
    %v1952 = vunpack.c.l.b16 %v1803
    %v1953 = vunpack.c.h.b16 %v1803
    %v1954 = vunpack.c.l.b16 %v1804
    %v1955 = vunpack.c.h.b16 %v1804
    %v1956 = vunpack.c.l.b16 %v1805
    %v1957 = vunpack.c.h.b16 %v1805
    %v1958 = vunpack.c.l.b16 %v1806
    %v1959 = vunpack.c.h.b16 %v1806
    %v1960 = vunpack.c.l.b16 %v1807
    %v1961 = vunpack.c.h.b16 %v1807
    %v1962 = vunpack.c.l.b16 %v1808
    %v1963 = vunpack.c.h.b16 %v1808
    %v1964 = vunpack.c.l.b16 %v1809
    %v1965 = vunpack.c.h.b16 %v1809
    %v1966 = vunpack.c.l.b16 %v1810
    %v1967 = vunpack.c.h.b16 %v1810
    %v1968 = vunpack.c.l.b16 %v1811
    %v1969 = vunpack.c.h.b16 %v1811
    %v1970 = vunpack.c.l.b16 %v1812
    %v1971 = vunpack.c.h.b16 %v1812
    %v1972 = vunpack.c.l.b16 %v1813
    %v1973 = vunpack.c.h.b16 %v1813
    %v1974 = vunpack.c.l.b16 %v1814
    %v1975 = vunpack.c.h.b16 %v1814
    %v1976 = vunpack.c.l.b16 %v1815
    %v1977 = vunpack.c.h.b16 %v1815
    %v1978 = vunpack.c.l.b16 %v1816
    %v1979 = vunpack.c.h.b16 %v1816
    %v1980 = vunpack.c.l.b16 %v1817
    %v1981 = vunpack.c.h.b16 %v1817
    %v1982 = vunpack.c.l.b16 %v1818
    %v1983 = vunpack.c.h.b16 %v1818
    %v1984 = vunpack.c.l.b16 %v1819
    %v1985 = vunpack.c.h.b16 %v1819
    %v1986 = vunpack.c.l.b16 %v1820
    %v1987 = vunpack.c.h.b16 %v1820
    %v1988 = vunpack.c.l.b16 %v1821
    %v1989 = vunpack.c.h.b16 %v1821
    %v1990 = vunpack.c.l.b16 %v1822
    %v1991 = vunpack.c.h.b16 %v1822
    %v1992 = vunpack.c.l.b16 %v1823
    %v1993 = vunpack.c.h.b16 %v1823
    %v1994 = vunpack.c.l.b16 %v1824
    %v1995 = vunpack.c.h.b16 %v1824
    %v1996 = vunpack.c.l.b16 %v1825
    %v1997 = vunpack.c.h.b16 %v1825
    %v1998 = vunpack.c.l.b16 %v1826
    %v1999 = vunpack.c.h.b16 %v1826
    %v2000 = vunpack.c.l.b16 %v1827
    %v2001 = vunpack.c.h.b16 %v1827
    %v2002 = vunpack.c.l.b16 %v1828
    %v2003 = vunpack.c.h.b16 %v1828
    %v2004 = vunpack.c.l.b16 %v1829
    %v2005 = vunpack.c.h.b16 %v1829
    %v2006 = vunpack.c.l.b16 %v1830
    %v2007 = vunpack.c.h.b16 %v1830
    %v2008 = vunpack.c.l.b16 %v1831
    %v2009 = vunpack.c.h.b16 %v1831
    %v2010 = vunpack.c.l.b16 %v1832
    %v2011 = vunpack.c.h.b16 %v1832
    %v2012 = vunpack.c.l.b16 %v1833
    %v2013 = vunpack.c.h.b16 %v1833
    %v2014 = vunpack.c.l.b16 %v1834
    %v2015 = vunpack.c.h.b16 %v1834
    %v2016 = vunpack.c.l.b16 %v1835
    %v2017 = vunpack.c.h.b16 %v1835
    %v2018 = vunpack.c.l.b16 %v1836
    %v2019 = vunpack.c.h.b16 %v1836
    %v2020 = vunpack.c.l.b16 %v1837
    %v2021 = vunpack.c.h.b16 %v1837
    %v2022 = vunpack.c.l.b16 %v1838
    %v2023 = vunpack.c.h.b16 %v1838
    %v2024 = vunpack.c.l.b16 %v1839
    %v2025 = vunpack.c.h.b16 %v1839
    %v2026 = vunpack.c.l.b16 %v1840
    %v2027 = vunpack.c.h.b16 %v1840
    %v2028 = vunpack.c.l.b16 %v1841
    %v2029 = vunpack.c.h.b16 %v1841
    %v2030 = vunpack.c.l.b16 %v1842
    %v2031 = vunpack.c.h.b16 %v1842
    %v2032 = vunpack.c.l.b16 %v1843
    %v2033 = vunpack.c.h.b16 %v1843
    %v2034 = vunpack.c.l.b16 %v1844
    %v2035 = vunpack.c.h.b16 %v1844
    %v2036 = vunpack.c.l.b16 %v1845
    %v2037 = vunpack.c.h.b16 %v1845
    %v2038 = vunpack.c.l.b16 %v1846
    %v2039 = vunpack.c.h.b16 %v1846
    %v2040 = vunpack.c.l.b16 %v1847
    %v2041 = vunpack.c.h.b16 %v1847
    %v2042 = vunpack.c.l.b16 %v1848
    %v2043 = vunpack.c.h.b16 %v1848
    %v2044 = vunpack.c.l.b16 %v1849
    %v2045 = vunpack.c.h.b16 %v1849
    %v2046 = vunpack.c.l.b16 %v1850
    %v2047 = vunpack.c.h.b16 %v1850
    %v2048 = vunpack.c.l.b16 %v1851
    %v2049 = vunpack.c.h.b16 %v1851
    %v2050 = vunpack.c.l.b16 %v1852
    %v2051 = vunpack.c.h.b16 %v1852
    %v2052 = vunpack.c.l.b16 %v1853
    %v2053 = vunpack.c.h.b16 %v1853
    %v2054 = vunpack.c.l.b16 %v1854
    %v2055 = vunpack.c.h.b16 %v1854
    %v2056 = vunpack.c.l.b16 %v1855
    %v2057 = vunpack.c.h.b16 %v1855
    %v2058 = vunpack.c.l.b16 %v1856
    %v2059 = vunpack.c.h.b16 %v1856
    %v2060 = vunpack.c.l.b16 %v1857
    %v2061 = vunpack.c.h.b16 %v1857
    %v2062 = vpack.c.b16 %v1936, %v1934
    %v2063 = vpack.c.b16 %v1937, %v1935
    %v2064 = vpack.c.b16 %v1940, %v1938
    %v2065 = vpack.c.b16 %v1941, %v1939
    %v2066 = vpack.c.b16 %v1944, %v1942
    %v2067 = vpack.c.b16 %v1945, %v1943
    %v2068 = vpack.c.b16 %v1948, %v1946
    %v2069 = vpack.c.b16 %v1949, %v1947
    %v2070 = vpack.c.b16 %v1952, %v1950
    %v2071 = vpack.c.b16 %v1953, %v1951
    %v2072 = vpack.c.b16 %v1956, %v1954
    %v2073 = vpack.c.b16 %v1957, %v1955
    %v2074 = vpack.c.b16 %v1960, %v1958
    %v2075 = vpack.c.b16 %v1961, %v1959
    %v2076 = vpack.c.b16 %v1964, %v1962
    %v2077 = vpack.c.b16 %v1965, %v1963
    %v2078 = vpack.c.b16 %v1968, %v1966
    %v2079 = vpack.c.b16 %v1969, %v1967
    %v2080 = vpack.c.b16 %v1972, %v1970
    %v2081 = vpack.c.b16 %v1973, %v1971
    %v2082 = vpack.c.b16 %v1976, %v1974
    %v2083 = vpack.c.b16 %v1977, %v1975
    %v2084 = vpack.c.b16 %v1980, %v1978
    %v2085 = vpack.c.b16 %v1981, %v1979
    %v2086 = vpack.c.b16 %v1984, %v1982
    %v2087 = vpack.c.b16 %v1985, %v1983
    %v2088 = vpack.c.b16 %v1988, %v1986
    %v2089 = vpack.c.b16 %v1989, %v1987
    %v2090 = vpack.c.b16 %v1992, %v1990
    %v2091 = vpack.c.b16 %v1993, %v1991
    %v2092 = vpack.c.b16 %v1996, %v1994
    %v2093 = vpack.c.b16 %v1997, %v1995
    %v2094 = vpack.c.b16 %v2000, %v1998
    %v2095 = vpack.c.b16 %v2001, %v1999
    %v2096 = vpack.c.b16 %v2004, %v2002
    %v2097 = vpack.c.b16 %v2005, %v2003
    %v2098 = vpack.c.b16 %v2008, %v2006
    %v2099 = vpack.c.b16 %v2009, %v2007
    %v2100 = vpack.c.b16 %v2012, %v2010
    %v2101 = vpack.c.b16 %v2013, %v2011
    %v2102 = vpack.c.b16 %v2016, %v2014
    %v2103 = vpack.c.b16 %v2017, %v2015
    %v2104 = vpack.c.b16 %v2020, %v2018
    %v2105 = vpack.c.b16 %v2021, %v2019
    %v2106 = vpack.c.b16 %v2024, %v2022
    %v2107 = vpack.c.b16 %v2025, %v2023
    %v2108 = vpack.c.b16 %v2028, %v2026
    %v2109 = vpack.c.b16 %v2029, %v2027
    %v2110 = vpack.c.b16 %v2032, %v2030
    %v2111 = vpack.c.b16 %v2033, %v2031
    %v2112 = vpack.c.b16 %v2036, %v2034
    %v2113 = vpack.c.b16 %v2037, %v2035
    %v2114 = vpack.c.b16 %v2040, %v2038
    %v2115 = vpack.c.b16 %v2041, %v2039
    %v2116 = vpack.c.b16 %v2044, %v2042
    %v2117 = vpack.c.b16 %v2045, %v2043
    %v2118 = vpack.c.b16 %v2048, %v2046
    %v2119 = vpack.c.b16 %v2049, %v2047
    %v2120 = vpack.c.b16 %v2052, %v2050
    %v2121 = vpack.c.b16 %v2053, %v2051
    %v2122 = vpack.c.b16 %v2056, %v2054
    %v2123 = vpack.c.b16 %v2057, %v2055
    %v2124 = vpack.c.b16 %v2060, %v2058
    %v2125 = vpack.c.b16 %v2061, %v2059
    %2190 = vmatprep.subr.bf16.mxu0 %v2063
    %2191 = vmatpush1.bf16.msra.mxu0 %v2062
    %2192 = vmatprep.subr.bf16.mxu0 %v2065
    %2193 = vmatpush1.bf16.msra.mxu0 %v2064
    %2194 = vmatprep.subr.bf16.mxu0 %v2067
    %2195 = vmatpush1.bf16.msra.mxu0 %v2066
    %2196 = vmatprep.subr.bf16.mxu0 %v2069
    %2197 = vmatpush1.bf16.msra.mxu0 %v2068
    %2198 = vmatprep.subr.bf16.mxu0 %v2071
    %2199 = vmatpush1.bf16.msra.mxu0 %v2070
    %2200 = vmatprep.subr.bf16.mxu0 %v2073
    %2201 = vmatpush1.bf16.msra.mxu0 %v2072
    %2202 = vmatprep.subr.bf16.mxu0 %v2075
    %2203 = vmatpush1.bf16.msra.mxu0 %v2074
    %2204 = vmatprep.subr.bf16.mxu0 %v2077
    %2205 = vmatpush1.bf16.msra.mxu0 %v2076
    %2206 = vmatprep.subr.bf16.mxu0 %v2079
    %2207 = vmatpush1.bf16.msra.mxu0 %v2078
    %2208 = vmatprep.subr.bf16.mxu0 %v2081
    %2209 = vmatpush1.bf16.msra.mxu0 %v2080
    %2210 = vmatprep.subr.bf16.mxu0 %v2083
    %2211 = vmatpush1.bf16.msra.mxu0 %v2082
    %2212 = vmatprep.subr.bf16.mxu0 %v2085
    %2213 = vmatpush1.bf16.msra.mxu0 %v2084
    %2214 = vmatprep.subr.bf16.mxu0 %v2087
    %2215 = vmatpush1.bf16.msra.mxu0 %v2086
    %2216 = vmatprep.subr.bf16.mxu0 %v2089
    %2217 = vmatpush1.bf16.msra.mxu0 %v2088
    %2218 = vmatprep.subr.bf16.mxu0 %v2091
    %2219 = vmatpush1.bf16.msra.mxu0 %v2090
    %2220 = vmatprep.subr.bf16.mxu0 %v2093
    %2221 = vmatpush1.bf16.msra.mxu0 %v2092
    %2222 = vmatprep.mubr.bf16.mxu0 %v1791
    %2223 = vmatmul.mubr.bf16.gmra.mrb[0].mxu0 %v1790
    %v2224 = vpop.f32.mrb[0].mxu0
    %v2225 = vadd.f32 %v1863, %v2224
    %v2226 = vpop.f32.mrb[0].mxu0
    %v2227 = vadd.f32 %v1867, %v2226
    %v2228 = vpop.f32.mrb[0].mxu0
    %v2229 = vadd.f32 %v1863, %v2228
    %v2230 = vpop.f32.mrb[0].mxu0
    %v2231 = vadd.f32 %v1867, %v2230
    %2232 = vdwg.mxu0
    %2233 = vmatprep.subr.bf16.mxu0 %v2095
    %2234 = vmatpush1.bf16.msra.mxu0 %v2094
    %2235 = vmatprep.subr.bf16.mxu0 %v2097
    %2236 = vmatpush1.bf16.msra.mxu0 %v2096
    %2237 = vmatprep.subr.bf16.mxu0 %v2099
    %2238 = vmatpush1.bf16.msra.mxu0 %v2098
    %2239 = vmatprep.subr.bf16.mxu0 %v2101
    %2240 = vmatpush1.bf16.msra.mxu0 %v2100
    %2241 = vmatprep.subr.bf16.mxu0 %v2103
    %2242 = vmatpush1.bf16.msra.mxu0 %v2102
    %2243 = vmatprep.subr.bf16.mxu0 %v2105
    %2244 = vmatpush1.bf16.msra.mxu0 %v2104
    %2245 = vmatprep.subr.bf16.mxu0 %v2107
    %2246 = vmatpush1.bf16.msra.mxu0 %v2106
    %2247 = vmatprep.subr.bf16.mxu0 %v2109
    %2248 = vmatpush1.bf16.msra.mxu0 %v2108
    %2249 = vmatprep.subr.bf16.mxu0 %v2111
    %2250 = vmatpush1.bf16.msra.mxu0 %v2110
    %2251 = vmatprep.subr.bf16.mxu0 %v2113
    %2252 = vmatpush1.bf16.msra.mxu0 %v2112
    %2253 = vmatprep.subr.bf16.mxu0 %v2115
    %2254 = vmatpush1.bf16.msra.mxu0 %v2114
    %2255 = vmatprep.subr.bf16.mxu0 %v2117
    %2256 = vmatpush1.bf16.msra.mxu0 %v2116
    %2257 = vmatprep.subr.bf16.mxu0 %v2119
    %2258 = vmatpush1.bf16.msra.mxu0 %v2118
    %2259 = vmatprep.subr.bf16.mxu0 %v2121
    %2260 = vmatpush1.bf16.msra.mxu0 %v2120
    %2261 = vmatprep.subr.bf16.mxu0 %v2123
    %2262 = vmatpush1.bf16.msra.mxu0 %v2122
    %2263 = vmatprep.subr.bf16.mxu0 %v2125
    %2264 = vmatpush1.bf16.msra.mxu0 %v2124
    %2265 = vmatprep.mubr.bf16.mxu0 %v1793
    %2266 = vmatmul.mubr.bf16.gmra.mrb[0].mxu0 %v1792
    %v2267 = vpop.f32.mrb[0].mxu0
    %v2268 = vadd.f32 %v2225, %v2267
    %v2269 = vpop.f32.mrb[0].mxu0
    %v2270 = vadd.f32 %v2227, %v2269
    %v2271 = vpop.f32.mrb[0].mxu0
    %v2272 = vadd.f32 %v2229, %v2271
    %v2273 = vpop.f32.mrb[0].mxu0
    %v2274 = vadd.f32 %v2231, %v2273
    %2275 = vdwg.mxu0
    %v2276 = vmax.f32 %v2268, 0.0
    %v2277 = vmax.f32 %v2270, 0.0
    %v2278 = vmax.f32 %v2272, 0.0
    %v2279 = vmax.f32 %v2274, 0.0
    %v2280 = vpack.c.bf16 %v2278, %v2276
    %v2281 = vpack.c.bf16 %v2279, %v2277
    %v2282 = vld [vmem:[#allocation7] sm:$0xf]
    %v2283 = vld [vmem:[#allocation7 + $0x4] sm:$0xf]
    %v2284 = vld [vmem:[#allocation7 + $0x8] sm:$0xf]
    %v2285 = vld [vmem:[#allocation7 + $0xc] sm:$0xf]
    %v2286 = vld [vmem:[#allocation7 + $0x10] sm:$0xf]
    %v2287 = vld [vmem:[#allocation7 + $0x14] sm:$0xf]
    %v2288 = vld [vmem:[#allocation7 + $0x18] sm:$0xf]
    %v2289 = vld [vmem:[#allocation7 + $0x1c] sm:$0xf]
    %v2290 = vld [vmem:[#allocation7 + $0x20] sm:$0xf]
    %v2291 = vld [vmem:[#allocation7 + $0x24] sm:$0xf]
    %v2292 = vld [vmem:[#allocation7 + $0x28] sm:$0xf]
    %v2293 = vld [vmem:[#allocation7 + $0x2c] sm:$0xf]
    %v2294 = vld [vmem:[#allocation7 + $0x30] sm:$0xf]
    %v2295 = vld [vmem:[#allocation7 + $0x34] sm:$0xf]
    %v2296 = vld [vmem:[#allocation7 + $0x38] sm:$0xf]
    %v2297 = vld [vmem:[#allocation7 + $0x3c] sm:$0xf]
    %v2298 = vld [vmem:[#allocation7 + $0x40] sm:$0xf]
    %v2299 = vld [vmem:[#allocation7 + $0x44] sm:$0xf]
    %v2300 = vld [vmem:[#allocation7 + $0x48] sm:$0xf]
    %v2301 = vld [vmem:[#allocation7 + $0x4c] sm:$0xf]
    %v2302 = vld [vmem:[#allocation7 + $0x50] sm:$0xf]
    %v2303 = vld [vmem:[#allocation7 + $0x54] sm:$0xf]
    %v2304 = vld [vmem:[#allocation7 + $0x58] sm:$0xf]
    %v2305 = vld [vmem:[#allocation7 + $0x5c] sm:$0xf]
    %v2306 = vld [vmem:[#allocation7 + $0x60] sm:$0xf]
    %v2307 = vld [vmem:[#allocation7 + $0x64] sm:$0xf]
    %v2308 = vld [vmem:[#allocation7 + $0x68] sm:$0xf]
    %v2309 = vld [vmem:[#allocation7 + $0x6c] sm:$0xf]
    %v2310 = vld [vmem:[#allocation7 + $0x70] sm:$0xf]
    %v2311 = vld [vmem:[#allocation7 + $0x74] sm:$0xf]
    %v2312 = vld [vmem:[#allocation7 + $0x78] sm:$0xf]
    %v2313 = vld [vmem:[#allocation7 + $0x7c] sm:$0xf]
    %v2314 = vld [vmem:[%s8] sm:$0x1]
    %v2316 = vlaneseq
    %v2317 = vshrl.u32 %v2316, 7
    %v2318 = vsub.s32 0, %v2317
    %v2319 = vrot.slane %v2314, %v2318
    %v2353 = vunpack.c.l.b16 %v2282
    %v2354 = vunpack.c.l.b16 %v2283
    %v2355 = vunpack.c.l.b16 %v2284
    %v2356 = vunpack.c.l.b16 %v2285
    %v2357 = vunpack.c.l.b16 %v2286
    %v2358 = vunpack.c.l.b16 %v2287
    %v2359 = vunpack.c.l.b16 %v2288
    %v2360 = vunpack.c.l.b16 %v2289
    %v2361 = vunpack.c.l.b16 %v2290
    %v2362 = vunpack.c.l.b16 %v2291
    %v2363 = vunpack.c.l.b16 %v2292
    %v2364 = vunpack.c.l.b16 %v2293
    %v2365 = vunpack.c.l.b16 %v2294
    %v2366 = vunpack.c.l.b16 %v2295
    %v2367 = vunpack.c.l.b16 %v2296
    %v2368 = vunpack.c.l.b16 %v2297
    %v2369 = vunpack.c.l.b16 %v2298
    %v2370 = vunpack.c.l.b16 %v2299
    %v2371 = vunpack.c.l.b16 %v2300
    %v2372 = vunpack.c.l.b16 %v2301
    %v2373 = vunpack.c.l.b16 %v2302
    %v2374 = vunpack.c.l.b16 %v2303
    %v2375 = vunpack.c.l.b16 %v2304
    %v2376 = vunpack.c.l.b16 %v2305
    %v2377 = vunpack.c.l.b16 %v2306
    %v2378 = vunpack.c.l.b16 %v2307
    %v2379 = vunpack.c.l.b16 %v2308
    %v2380 = vunpack.c.l.b16 %v2309
    %v2381 = vunpack.c.l.b16 %v2310
    %v2382 = vunpack.c.l.b16 %v2311
    %v2383 = vunpack.c.l.b16 %v2312
    %v2384 = vunpack.c.l.b16 %v2313
    %v2385 = vpack.c.b16 %v2354, %v2353
    %v2386 = vpack.c.b16 %v2356, %v2355
    %v2387 = vpack.c.b16 %v2358, %v2357
    %v2388 = vpack.c.b16 %v2360, %v2359
    %v2389 = vpack.c.b16 %v2362, %v2361
    %v2390 = vpack.c.b16 %v2364, %v2363
    %v2391 = vpack.c.b16 %v2366, %v2365
    %v2392 = vpack.c.b16 %v2368, %v2367
    %v2393 = vpack.c.b16 %v2370, %v2369
    %v2394 = vpack.c.b16 %v2372, %v2371
    %v2395 = vpack.c.b16 %v2374, %v2373
    %v2396 = vpack.c.b16 %v2376, %v2375
    %v2397 = vpack.c.b16 %v2378, %v2377
    %v2398 = vpack.c.b16 %v2380, %v2379
    %v2399 = vpack.c.b16 %v2382, %v2381
    %v2400 = vpack.c.b16 %v2384, %v2383
    %2417 = vmatprep.subr.bf16.mxu0 0
    %2418 = vmatpush1.bf16.msra.mxu0 %v2385
    %2419 = vmatprep.subr.bf16.mxu0 0
    %2420 = vmatpush1.bf16.msra.mxu0 %v2386
    %2421 = vmatprep.subr.bf16.mxu0 0
    %2422 = vmatpush1.bf16.msra.mxu0 %v2387
    %2423 = vmatprep.subr.bf16.mxu0 0
    %2424 = vmatpush1.bf16.msra.mxu0 %v2388
    %2425 = vmatprep.subr.bf16.mxu0 0
    %2426 = vmatpush1.bf16.msra.mxu0 %v2389
    %2427 = vmatprep.subr.bf16.mxu0 0
    %2428 = vmatpush1.bf16.msra.mxu0 %v2390
    %2429 = vmatprep.subr.bf16.mxu0 0
    %2430 = vmatpush1.bf16.msra.mxu0 %v2391
    %2431 = vmatprep.subr.bf16.mxu0 0
    %2432 = vmatpush1.bf16.msra.mxu0 %v2392
    %2433 = vmatprep.subr.bf16.mxu0 0
    %2434 = vmatpush1.bf16.msra.mxu0 %v2393
    %2435 = vmatprep.subr.bf16.mxu0 0
    %2436 = vmatpush1.bf16.msra.mxu0 %v2394
    %2437 = vmatprep.subr.bf16.mxu0 0
    %2438 = vmatpush1.bf16.msra.mxu0 %v2395
    %2439 = vmatprep.subr.bf16.mxu0 0
    %2440 = vmatpush1.bf16.msra.mxu0 %v2396
    %2441 = vmatprep.subr.bf16.mxu0 0
    %2442 = vmatpush1.bf16.msra.mxu0 %v2397
    %2443 = vmatprep.subr.bf16.mxu0 0
    %2444 = vmatpush1.bf16.msra.mxu0 %v2398
    %2445 = vmatprep.subr.bf16.mxu0 0
    %2446 = vmatpush1.bf16.msra.mxu0 %v2399
    %2447 = vmatprep.subr.bf16.mxu0 0
    %2448 = vmatpush1.bf16.msra.mxu0 %v2400
    %2449 = vmatprep.mubr.bf16.mxu0 %v2281
    %2450 = vmatmul.mubr.bf16.gmra.mrb[0].mxu0 %v2280
    %v2451 = vpop.f32.mrb[0].mxu0
    %v2452 = vadd.f32 %v2319, %v2451
    %v2453 = vpop.f32.mrb[0].mxu0
    %v2454 = vpop.f32.mrb[0].mxu0
    %v2455 = vadd.f32 %v2319, %v2454
    %v2456 = vpop.f32.mrb[0].mxu0
    %2457 = vdwg.mxu0
    %v2458 = vtanh.pop %v2452
    %v2459 = vtanh.pop %v2455
    %v2460 = vpack.c.bf16 %v2459, %v2458
    %v2462 = vunpack.c.l.b16 %v2460
    %v2463 = vunpack.c.h.b16 %v2460
    %v2464 = vpack.c.b16 %v2462, %v2462
    %v2465 = vpack.c.b16 %v2463, %v2463
    %2468 = vst [vmem:[%s9] sm:$0xf] %v2464
    %2469 = vst [vmem:[%s9 + $0x4] sm:$0xf] %v2465
    // Predicated region
    $region54: #{decoder_forward.1} parent=1 // pred_check
      _
    $region55: #{decoder_forward.1} parent=1 // pred_check_branch
      %2471 = sbr.rel (0) target = $region57
    $region56: #{decoder_forward.1} parent=1 // pred_region
      _
    $region57: #{decoder_forward.1} parent=1 // pred_fallthru
      _
    // Predicated region
    $region58: #{decoder_forward.1} parent=1 // pred_check
      _
    $region59: #{decoder_forward.1} parent=1 // pred_check_branch
      %2473 = sbr.rel (0) target = $region61
    $region60: #{decoder_forward.1} parent=1 // pred_region
      _
    $region61: #{decoder_forward.1} parent=1 // pred_fallthru
      _
    %2474 = vsyncpa [#allocation3], 1
    %2475 = vsyncpa [#allocation5], 1
    %2476 = vsyncpa [#allocation8], 1

</llo_original>
